<compile_context>
chip_gen: v7x
topology: tpu7x:2x2x1
jax: 0.10.0
libtpu: 0.0.40
codegen_flags: <defaults>
</compile_context>

<pallas_src>
import functools

import jax
import jax.numpy as jnp
from jax import lax
from jax.experimental import pallas as pl
from jax.experimental.pallas import tpu as pltpu


LANE = 128          # lane width: H/E/V padded to a multiple of this
SUBLANE = 8
MIN_B_CHUNK = 16    # bf16 min sublane tile (16, 128)
MAX_B_CHUNK = 128   # MXU M rows per recurrent matmul
MAX_T_CHUNK = 64    # time steps per grid step


def _round_up(x, m):
    return ((x + m - 1) // m) * m


def _pick_tile(n, cap, step):
    """Largest tile <= cap that divides n (n and cap are multiples of step)."""
    t = max(step, min(n, cap))
    t -= t % step
    while n % t:
        t -= step
    return t


def _vmem_budget_bytes():
    """~75% of the device's VMEM (v5e/v6e: 128 MiB, v7x: 64 MiB).

    Conservative 64 MiB fallback if the query is unavailable, so the derived
    scoped limit never exceeds physical VMEM on any generation."""
    cap = 64 * 1024 * 1024
    try:
        info = pltpu.get_tpu_info()
        cap = int(getattr(info, "vmem_capacity_bytes", cap))
    except Exception:
        pass
    return int(cap * 3 // 4)


def _lstm_vmem_bytes(b_chunk, t_chunk, in_pad, h_pad):
    """Estimated VMEM footprint of one lstm_layer grid step (double-buffered
    activation blocks, double-buffered-but-constant weight blocks, scratch)."""
    act = 2 * (t_chunk * b_chunk * in_pad * 2)          # x block  (bf16, 2 bufs)
    act += 2 * (t_chunk * b_chunk * h_pad * 2)          # out block (bf16, 2 bufs)
    wts = 2 * (in_pad * 4 * h_pad * 2)                  # w_ih (bf16, 2 bufs)
    wts += 2 * (h_pad * 4 * h_pad * 2)                  # w_hh (bf16, 2 bufs)
    wts += 2 * (4 * h_pad * 4)                          # bias (f32, 2 bufs)
    scr = 2 * (b_chunk * h_pad * 4)                     # h, c (f32)
    scr += t_chunk * b_chunk * 4 * h_pad * 4            # gx (f32)
    return act + wts + scr


def _lstm_chunks(B, T, in_pad, h_pad, budget):
    """Pick (B_CHUNK, T_CHUNK) for the LSTM grid.

    B_CHUNK fills the MXU M dimension (<=128, >=16); when it would give only a
    single batch chunk it is halved so a 2-TensorCore chip (v7x) can split the
    'parallel' batch axis.  T_CHUNK targets 32-64 steps; both shrink until the
    footprint fits the per-generation VMEM budget."""
    b = min(MAX_B_CHUNK, _round_up(B, MIN_B_CHUNK))
    if b >= 2 * MIN_B_CHUNK and _round_up(B, b) == b:
        b = _round_up(b // 2, MIN_B_CHUNK)              # expose >=2 batch chunks
    t = min(MAX_T_CHUNK, _round_up(T, SUBLANE))
    while t > SUBLANE and _lstm_vmem_bytes(b, t, in_pad, h_pad) > budget:
        t -= SUBLANE
    while b > MIN_B_CHUNK and _lstm_vmem_bytes(b, t, in_pad, h_pad) > budget:
        b -= MIN_B_CHUNK
    return b, t


# ----------------------------------------------------------------------------
# Pallas kernels
# ----------------------------------------------------------------------------
def _lstm_chunk_kernel(x_ref, wih_ref, whh_ref, b_ref, out_ref,
                       h_scr, c_scr, gx_scr):
    """One (batch-chunk, time-chunk) grid step of an LSTM layer.

    x_ref:   (Tc, Bc, E_pad)     bf16  time-major inputs
    wih_ref: (E_pad, 4*H_pad)    bf16  input->gates weights (i, f, g, o)
    whh_ref: (H_pad, 4*H_pad)    bf16  hidden->gates weights
    b_ref:   (1, 4*H_pad)        f32   combined bias (bias_ih + bias_hh)
    out_ref: (Tc, Bc, H_pad)     bf16  hidden state at every step
    h_scr, c_scr: (Bc, H_pad) f32 scratch carrying the recurrence across the
                  time grid axis (reset when a new batch chunk starts)
    gx_scr:  (Tc, Bc, 4*H_pad) f32 hoisted input-projection buffer
    """
    Tc, Bc, E = x_ref.shape
    H = h_scr.shape[1]

    # New batch chunk -> reset the recurrent state.
    @pl.when(pl.program_id(1) == 0)
    def _():
        h_scr[...] = jnp.zeros_like(h_scr)
        c_scr[...] = jnp.zeros_like(c_scr)

    # Hoisted input projection for the whole chunk: one (Tc*Bc, E) @ (E, 4H)
    # MXU matmul (removes ~half the per-step MXU work + the bias add from the
    # serial path).
    x_flat = x_ref[...].reshape(Tc * Bc, E)
    gx = jnp.dot(x_flat, wih_ref[...], preferred_element_type=jnp.float32)
    gx_scr[...] = (gx + b_ref[...]).reshape(Tc, Bc, 4 * H)
    # TODO(synk): optionally store gx in bf16 to halve this scratch on v7x
    # (small numeric deviation from the f32-accumulation reference).

    w_hh = whh_ref[...]

    def step(t, carry):
        h, c = carry                                             # f32 (Bc, H)
        gates = gx_scr[t] + jnp.dot(h.astype(w_hh.dtype), w_hh,
                                    preferred_element_type=jnp.float32)
        i_g = jax.nn.sigmoid(gates[:, 0 * H:1 * H])
        f_g = jax.nn.sigmoid(gates[:, 1 * H:2 * H])
        g_g = jnp.tanh(gates[:, 2 * H:3 * H])
        o_g = jax.nn.sigmoid(gates[:, 3 * H:4 * H])
        c_new = f_g * c + i_g * g_g
        h_new = o_g * jnp.tanh(c_new)
        out_ref[t] = h_new.astype(out_ref.dtype)
        return h_new, c_new

    # Fully unrolled: lets the scheduler overlap the out_ref[t] store and the
    # gx_scr[t+1] read with step t's EUP-bound sigmoids/tanh.
    h, c = lax.fori_loop(0, Tc, step, (h_scr[...], c_scr[...]), unroll=True)
    h_scr[...] = h
    c_scr[...] = c


def _head_kernel(x_ref, w_ref, b_ref, o_ref):
    """One (vocab-tile, row-tile) of the final projection."""
    o_ref[...] = (
        jnp.dot(x_ref[...], w_ref[...], preferred_element_type=jnp.float32)
        + b_ref[...]
    ).astype(o_ref.dtype)


# ----------------------------------------------------------------------------
# pallas_call wrappers
# ----------------------------------------------------------------------------
def lstm_layer(x, w_ih_t, w_hh_t, bias, *, b_chunk, t_chunk, vmem_limit):
    """x: (T_pad, B_pad, in_pad) bf16 -> (T_pad, B_pad, H_pad) bf16."""
    T_pad, B_pad, in_pad = x.shape
    H_pad = w_hh_t.shape[0]
    grid = (B_pad // b_chunk, T_pad // t_chunk)
    # NOTE: the weight/bias index_maps are constant, so Pallas streams them
    # from HBM only once; the default double-buffering only costs VMEM, which
    # _lstm_vmem_bytes budgets for when picking the chunk sizes.
    return pl.pallas_call(
        _lstm_chunk_kernel,
        out_shape=jax.ShapeDtypeStruct((T_pad, B_pad, H_pad), jnp.bfloat16),
        grid_spec=pltpu.PrefetchScalarGridSpec(
            num_scalar_prefetch=0,
            grid=grid,
            in_specs=[
                pl.BlockSpec((t_chunk, b_chunk, in_pad), lambda b, t: (t, b, 0)),
                pl.BlockSpec((in_pad, 4 * H_pad), lambda b, t: (0, 0)),
                pl.BlockSpec((H_pad, 4 * H_pad), lambda b, t: (0, 0)),
                pl.BlockSpec((1, 4 * H_pad), lambda b, t: (0, 0)),
            ],
            out_specs=pl.BlockSpec((t_chunk, b_chunk, H_pad),
                                   lambda b, t: (t, b, 0)),
            scratch_shapes=[
                pltpu.VMEM((b_chunk, H_pad), jnp.float32),               # h
                pltpu.VMEM((b_chunk, H_pad), jnp.float32),               # c
                pltpu.VMEM((t_chunk, b_chunk, 4 * H_pad), jnp.float32),  # x@W_ih
            ],
        ),
        compiler_params=pltpu.CompilerParams(
            # batch chunks are independent -> "parallel" (v7x splits across TCs)
            # time chunks carry h/c in scratch -> "arbitrary" (sequential)
            dimension_semantics=("parallel", "arbitrary"),
            vmem_limit_bytes=int(vmem_limit),
        ),
    )(x, w_ih_t, w_hh_t, bias)


def _head_tiles(n_rows, h_pad, v_pad, budget):
    tm = _pick_tile(n_rows, 512, SUBLANE)
    tn = _pick_tile(v_pad, 1024, LANE)

    def est(tm_, tn_):
        return (2 * tm_ * h_pad * 2 + 2 * h_pad * tn_ * 2
                + 2 * tn_ * 4 + 2 * tm_ * tn_ * 4)

    while tn > LANE and est(tm, tn) > budget:
        tn = _pick_tile(v_pad, tn - LANE, LANE)
    while tm > SUBLANE and est(tm, tn) > budget:
        tm = _pick_tile(n_rows, tm - SUBLANE, SUBLANE)
    return tm, tn


def ffn(x, w_t, b, *, vmem_limit):
    """x: (N, H_pad) bf16 (rows already (batch, time)-major),
    w_t: (H_pad, V_pad) bf16, b: (1, V_pad) f32 -> (N, V_pad) f32 logits."""
    N, H_pad = x.shape
    V_pad = w_t.shape[1]
    tm, tn = _head_tiles(N, H_pad, V_pad, vmem_limit)
    # Vocab axis OUTER, rows inner: each (H_pad, tn) weight tile is fetched
    # from HBM exactly once and reused across every row tile; only the much
    # smaller activation slab is re-streamed per vocab tile.
    grid = (V_pad // tn, N // tm)
    # TODO(synk): for very large H add a K grid axis with an f32 VMEM accumulator.
    return pl.pallas_call(
        _head_kernel,
        out_shape=jax.ShapeDtypeStruct((N, V_pad), jnp.float32),
        grid_spec=pltpu.PrefetchScalarGridSpec(
            num_scalar_prefetch=0,
            grid=grid,
            in_specs=[
                pl.BlockSpec((tm, H_pad), lambda v, r: (r, 0)),
                pl.BlockSpec((H_pad, tn), lambda v, r: (0, v)),
                pl.BlockSpec((1, tn), lambda v, r: (0, v)),
            ],
            out_specs=pl.BlockSpec((tm, tn), lambda v, r: (r, v)),
        ),
        compiler_params=pltpu.CompilerParams(
            dimension_semantics=("parallel", "parallel"),
            vmem_limit_bytes=int(vmem_limit),
        ),
    )(x, w_t, b)


@functools.partial(jax.jit, static_argnames=("vocab_size",))
def lstm_lm_forward(tokens, params, *, vocab_size):
    """tokens: (B, T) int32 -> logits (B, T, vocab_size) f32."""
    B, T = tokens.shape
    emb = params["embedding"]                          # (V, E_pad) bf16
    E_pad = emb.shape[1]
    H_pad = params["lstm"][0]["w_hh_t"].shape[0]
    V_pad = params["ffn_w_t"].shape[1]

    budget = _vmem_budget_bytes()
    b_chunk, t_chunk = _lstm_chunks(B, T, max(E_pad, H_pad), H_pad, budget)
    B_pad = _round_up(B, b_chunk)
    T_pad = _round_up(T, t_chunk)

    tok = jnp.pad(tokens, ((0, B_pad - B), (0, T_pad - T)))
    # bf16 gather, time-major directly (no (B,T,E)->(T,B,E) activation transpose).
    # TODO(synk): fuse the gather into layer 0 via PrefetchScalarGridSpec +
    # pl.Element row index_map so x never materializes in HBM.
    x = emb[tok.T]                                     # (T_pad, B_pad, E_pad) bf16

    for layer in params["lstm"]:
        # TODO(synk): fuse consecutive layers per (b,t) chunk when both layers'
        # weights fit the VMEM budget (saves one (T,B,H) bf16 HBM round trip
        # per extra layer).
        x = lstm_layer(x, layer["w_ih_t"], layer["w_hh_t"], layer["bias"],
                       b_chunk=b_chunk, t_chunk=t_chunk, vmem_limit=budget)

    # Apply the (T,B)->(B,T) layout change once to the small bf16 hidden states
    # so the head writes logits directly in (B, T, V) order -- the f32 logits
    # never take an extra HBM transpose round trip.
    rows = jnp.transpose(x, (1, 0, 2)).reshape(B_pad * T_pad, H_pad)
    logits = ffn(rows, params["ffn_w_t"], params["ffn_b"], vmem_limit=budget)
    logits = logits.reshape(B_pad, T_pad, V_pad)
    return logits[:B, :T, :vocab_size]


# ----------------------------------------------------------------------------
# Deterministic parameter init (matches PyTorch init_weights semantics)
# ----------------------------------------------------------------------------
def _xavier_normal(key, shape):
    fan_out, fan_in = shape                      # torch (out, in) convention
    std = (2.0 / (fan_in + fan_out)) ** 0.5
    return std * jax.random.normal(key, shape, dtype=jnp.float32)


def _pad_gate_weight(w_t, in_pad, H, H_pad):
    """(in_dim, 4H) with gate blocks [i|f|g|o] -> (in_pad, 4*H_pad), zero-padded
    per gate so each gate slice stays lane-aligned."""
    in_dim = w_t.shape[0]
    w4 = w_t.reshape(in_dim, 4, H)
    out = jnp.zeros((in_pad, 4, H_pad), w_t.dtype)
    out = out.at[:in_dim, :, :H].set(w4)
    return out.reshape(in_pad, 4 * H_pad)


def _pad_gate_bias(b, H, H_pad):
    b4 = b.reshape(4, H)
    out = jnp.zeros((4, H_pad), b.dtype)
    out = out.at[:, :H].set(b4)
    return out.reshape(1, 4 * H_pad)


def init_params(key, vocab_size, embedding_dim, hidden_dim, num_layers):
    V, E, H = vocab_size, embedding_dim, hidden_dim
    V_pad = _round_up(V, LANE)
    E_pad = _round_up(E, LANE)
    H_pad = _round_up(H, LANE)

    keys = jax.random.split(key, 2 + 2 * num_layers)
    emb = _xavier_normal(keys[0], (V, E))
    ffn_w = _xavier_normal(keys[1], (V, H))          # torch Linear weight (out, in)
    ffn_b = jnp.zeros((V,), jnp.float32)             # init.zeros_ in the module

    ref_params = {"embedding": emb, "ffn_w": ffn_w, "ffn_b": ffn_b, "lstm": []}
    kernel_params = {
        # bf16 table -> the time-major gather reads half the bytes.
        "embedding": (jnp.zeros((V, E_pad), jnp.bfloat16)
                      .at[:, :E].set(emb.astype(jnp.bfloat16))),
        "ffn_w_t": (jnp.zeros((H_pad, V_pad), jnp.float32)
                    .at[:H, :V].set(ffn_w.T).astype(jnp.bfloat16)),
        # Copy the real head bias into the padded buffer (fixes the previous
        # silently-zero bias; padded vocab columns stay exactly zero).
        "ffn_b": jnp.zeros((1, V_pad), jnp.float32).at[0, :V].set(ffn_b),
        "lstm": [],
    }

    for l in range(num_layers):
        in_dim = E if l == 0 else H
        in_pad = E_pad if l == 0 else H_pad
        w_ih = _xavier_normal(keys[2 + 2 * l], (4 * H, in_dim))
        w_hh = _xavier_normal(keys[3 + 2 * l], (4 * H, H))
        # bias_ih = bias_hh = zeros with forget slice [H:2H] = 1.0 each
        # -> combined bias has 2.0 on the forget gate.
        bias = jnp.zeros((4 * H,), jnp.float32).at[H:2 * H].set(2.0)
        ref_params["lstm"].append(dict(w_ih=w_ih, w_hh=w_hh, bias=bias))
        kernel_params["lstm"].append(dict(
            w_ih_t=_pad_gate_weight(w_ih.T, in_pad, H, H_pad).astype(jnp.bfloat16),
            w_hh_t=_pad_gate_weight(w_hh.T, H_pad, H, H_pad).astype(jnp.bfloat16),
            bias=_pad_gate_bias(bias, H, H_pad),
        ))
    return kernel_params, ref_params


# ----------------------------------------------------------------------------
# Pure-JAX reference (mirrors the kernel's bf16-matmul / f32-state math,
# on the UNPADDED weights -> also validates that padding is semantics-free)
# ----------------------------------------------------------------------------
def reference_forward(tokens, ref_params, hidden_dim):
    bf16 = jnp.bfloat16
    B, T = tokens.shape
    H = hidden_dim
    x = ref_params["embedding"][tokens.T].astype(bf16)        # (T, B, E)
    for layer in ref_params["lstm"]:
        w_ih_t = layer["w_ih"].T.astype(bf16)
        w_hh_t = layer["w_hh"].T.astype(bf16)
        bias = layer["bias"]

        def step(carry, x_t, w_ih_t=w_ih_t, w_hh_t=w_hh_t, bias=bias):
            h, c = carry
            gates = (jnp.dot(x_t, w_ih_t, preferred_element_type=jnp.float32)
                     + jnp.dot(h.astype(bf16), w_hh_t,
                               preferred_element_type=jnp.float32)
                     + bias)
            i = jax.nn.sigmoid(gates[:, :H])
            f = jax.nn.sigmoid(gates[:, H:2 * H])
            g = jnp.tanh(gates[:, 2 * H:3 * H])
            o = jax.nn.sigmoid(gates[:, 3 * H:])
            c = f * c + i * g
            h = o * jnp.tanh(c)
            return (h, c), h.astype(bf16)

        init = (jnp.zeros((B, H), jnp.float32), jnp.zeros((B, H), jnp.float32))
        _, x = lax.scan(step, init, x)                        # (T, B, H) bf16
    out = jnp.transpose(x, (1, 0, 2)).reshape(B * T, H)       # (B*T, H)
    logits = (jnp.dot(out, ref_params["ffn_w"].T.astype(bf16),
                      preferred_element_type=jnp.float32)
              + ref_params["ffn_b"])
    return logits.reshape(B, T, -1)


# ----------------------------------------------------------------------------
if __name__ == "__main__":
    vocab_size, embedding_dim, hidden_dim, num_layers = 64, 16, 32, 2
    B, T = 2, 8

    key = jax.random.PRNGKey(0)
    k_params, k_tokens = jax.random.split(key)
    params, ref_params = init_params(
        k_params, vocab_size, embedding_dim, hidden_dim, num_layers)
    tokens = jax.random.randint(k_tokens, (B, T), 0, vocab_size, dtype=jnp.int32)

    logits = lstm_lm_forward(tokens, params, vocab_size=vocab_size)
    logits = jax.block_until_ready(logits)
    assert logits.shape == (B, T, vocab_size)

    ref = reference_forward(tokens, ref_params, hidden_dim)
    max_err = float(jnp.max(jnp.abs(logits - ref)))
    assert jnp.allclose(logits, ref, rtol=5e-3, atol=5e-3), f"max abs err {max_err}"

    print("KERNEL_OK")
</pallas_src>

<mosaic_0001>
module attributes {stable_mosaic.version = 11 : i64} {
  func.func @_head_kernel(%arg0: i32, %arg1: i32, %arg2: memref<128x128xbf16, #tpu.memory_space<vmem>>, %arg3: memref<128x128xbf16, #tpu.memory_space<vmem>>, %arg4: memref<1x128xf32, #tpu.memory_space<vmem>>, %arg5: memref<128x128xf32, #tpu.memory_space<vmem>>) attributes {dimension_semantics = [#tpu.dimension_semantics<parallel>, #tpu.dimension_semantics<parallel>], iteration_bounds = array<i64: 1, 1>, scalar_prefetch = 0 : i64, scratch_operands = 0 : i64, tpu.core_type = #tpu.core_type<tc>, window_params = [{transform_indices = @transform_0, window_bounds = array<i64: 128, 128>}, {transform_indices = @transform_1, window_bounds = array<i64: 128, 128>}, {transform_indices = @transform_2, window_bounds = array<i64: 1, 128>}, {transform_indices = @transform_3, window_bounds = array<i64: 128, 128>}]} {
    %c0 = arith.constant 0 : index
    %c0_0 = arith.constant 0 : index
    %0 = vector.load %arg2[%c0, %c0_0] : memref<128x128xbf16, #tpu.memory_space<vmem>>, vector<128x128xbf16>
    %c0_1 = arith.constant 0 : index
    %c0_2 = arith.constant 0 : index
    %1 = vector.load %arg3[%c0_1, %c0_2] : memref<128x128xbf16, #tpu.memory_space<vmem>>, vector<128x128xbf16>
    %cst = arith.constant dense<0.000000e+00> : vector<128x128xf32>
    %2 = tpu.matmul %0, %1, %cst {dimension_numbers = #tpu.dot_dimension_numbers<[1], [0], [0], [1], [0, 0, 1, 1], [], []>} : vector<128x128xbf16>, vector<128x128xbf16>, vector<128x128xf32> -> vector<128x128xf32>
    %c0_3 = arith.constant 0 : index
    %c0_4 = arith.constant 0 : index
    %3 = vector.load %arg4[%c0_3, %c0_4] : memref<1x128xf32, #tpu.memory_space<vmem>>, vector<1x128xf32>
    %4 = vector.broadcast %3 : vector<1x128xf32> to vector<128x128xf32>
    %5 = arith.addf %2, %4 : vector<128x128xf32>
    %c0_5 = arith.constant 0 : index
    %c0_6 = arith.constant 0 : index
    %6 = vector.load %arg5[%c0_5, %c0_6] : memref<128x128xf32, #tpu.memory_space<vmem>>, vector<128x128xf32>
    tpu.vector_store %arg5[%c0_5, %c0_6], %5 {strides = array<i32>} : memref<128x128xf32, #tpu.memory_space<vmem>>, vector<128x128xf32>,
    return
  }
  func.func @transform_0(%arg0: i32, %arg1: i32) -> (i32, i32) {
    %c0_i32 = arith.constant 0 : i32
    %c0_i32_0 = arith.constant 0 : i32
    return %arg1, %c0_i32 : i32, i32
  }
  func.func @transform_1(%arg0: i32, %arg1: i32) -> (i32, i32) {
    %c0_i32 = arith.constant 0 : i32
    %c0_i32_0 = arith.constant 0 : i32
    return %c0_i32, %arg0 : i32, i32
  }
  func.func @transform_2(%arg0: i32, %arg1: i32) -> (i32, i32) {
    %c0_i32 = arith.constant 0 : i32
    %c0_i32_0 = arith.constant 0 : i32
    return %c0_i32, %arg0 : i32, i32
  }
  func.func @transform_3(%arg0: i32, %arg1: i32) -> (i32, i32) {
    %c0_i32 = arith.constant 0 : i32
    return %arg1, %arg0 : i32, i32
  }
}

module attributes {stable_mosaic.version = 11 : i64} {
  func.func @_lstm_chunk_kernel(%arg0: i32, %arg1: i32, %arg2: memref<8x16x128xbf16, #tpu.memory_space<vmem>>, %arg3: memref<128x512xbf16, #tpu.memory_space<vmem>>, %arg4: memref<128x512xbf16, #tpu.memory_space<vmem>>, %arg5: memref<1x512xf32, #tpu.memory_space<vmem>>, %arg6: memref<8x16x128xbf16, #tpu.memory_space<vmem>>, %arg7: memref<16x128xf32, #tpu.memory_space<vmem>>, %arg8: memref<16x128xf32, #tpu.memory_space<vmem>>, %arg9: memref<8x16x512xf32, #tpu.memory_space<vmem>>) attributes {dimension_semantics = [#tpu.dimension_semantics<parallel>, #tpu.dimension_semantics<arbitrary>], iteration_bounds = array<i64: 1, 1>, scalar_prefetch = 0 : i64, scratch_operands = 3 : i64, tpu.core_type = #tpu.core_type<tc>, window_params = [{transform_indices = @transform_0, window_bounds = array<i64: 8, 16, 128>}, {pipeline_mode = #tpu.pipeline_mode<synchronous>, transform_indices = @transform_1, window_bounds = array<i64: 128, 512>}, {pipeline_mode = #tpu.pipeline_mode<synchronous>, transform_indices = @transform_2, window_bounds = array<i64: 128, 512>}, {pipeline_mode = #tpu.pipeline_mode<synchronous>, transform_indices = @transform_3, window_bounds = array<i64: 1, 512>}, {transform_indices = @transform_4, window_bounds = array<i64: 8, 16, 128>}]} {
    %c0_i32 = arith.constant 0 : i32
    %0 = arith.cmpi eq, %arg1, %c0_i32 : i32
    %1 = arith.extui %0 : i1 to i32
    %c0_i32_0 = arith.constant 0 : i32
    %2 = arith.cmpi ne, %1, %c0_i32_0 : i32
    scf.if %2 {
      %cst_85 = arith.constant 0.000000e+00 : f32
      %305 = vector.broadcast %cst_85 : f32 to vector<16x128xf32>
      %c0_86 = arith.constant 0 : index
      %c0_87 = arith.constant 0 : index
      %306 = vector.load %arg7[%c0_86, %c0_87] : memref<16x128xf32, #tpu.memory_space<vmem>>, vector<16x128xf32>
      tpu.vector_store %arg7[%c0_86, %c0_87], %305 {strides = array<i32>} : memref<16x128xf32, #tpu.memory_space<vmem>>, vector<16x128xf32>,
      %cst_88 = arith.constant 0.000000e+00 : f32
      %307 = vector.broadcast %cst_88 : f32 to vector<16x128xf32>
      %c0_89 = arith.constant 0 : index
      %c0_90 = arith.constant 0 : index
      %308 = vector.load %arg8[%c0_89, %c0_90] : memref<16x128xf32, #tpu.memory_space<vmem>>, vector<16x128xf32>
      tpu.vector_store %arg8[%c0_89, %c0_90], %307 {strides = array<i32>} : memref<16x128xf32, #tpu.memory_space<vmem>>, vector<16x128xf32>,
    } else {
    }
    %c0 = arith.constant 0 : index
    %c0_1 = arith.constant 0 : index
    %c0_2 = arith.constant 0 : index
    %3 = vector.load %arg2[%c0, %c0_1, %c0_2] : memref<8x16x128xbf16, #tpu.memory_space<vmem>>, vector<8x16x128xbf16>
    %4 = vector.shape_cast %3 : vector<8x16x128xbf16> to vector<128x128xbf16>
    %c0_3 = arith.constant 0 : index
    %c0_4 = arith.constant 0 : index
    %5 = vector.load %arg3[%c0_3, %c0_4] : memref<128x512xbf16, #tpu.memory_space<vmem>>, vector<128x512xbf16>
    %cst = arith.constant dense<0.000000e+00> : vector<128x512xf32>
    %6 = tpu.matmul %4, %5, %cst {dimension_numbers = #tpu.dot_dimension_numbers<[1], [0], [0], [1], [0, 0, 1, 1], [], []>} : vector<128x128xbf16>, vector<128x512xbf16>, vector<128x512xf32> -> vector<128x512xf32>
    %c0_5 = arith.constant 0 : index
    %c0_6 = arith.constant 0 : index
    %7 = vector.load %arg5[%c0_5, %c0_6] : memref<1x512xf32, #tpu.memory_space<vmem>>, vector<1x512xf32>
    %8 = vector.broadcast %7 : vector<1x512xf32> to vector<128x512xf32>
    %9 = arith.addf %6, %8 : vector<128x512xf32>
    %10 = vector.shape_cast %9 : vector<128x512xf32> to vector<8x16x512xf32>
    %c0_7 = arith.constant 0 : index
    %c0_8 = arith.constant 0 : index
    %c0_9 = arith.constant 0 : index
    %11 = vector.load %arg9[%c0_7, %c0_8, %c0_9] : memref<8x16x512xf32, #tpu.memory_space<vmem>>, vector<8x16x512xf32>
    tpu.vector_store %arg9[%c0_7, %c0_8, %c0_9], %10 {strides = array<i32>} : memref<8x16x512xf32, #tpu.memory_space<vmem>>, vector<8x16x512xf32>,
    %c0_10 = arith.constant 0 : index
    %c0_11 = arith.constant 0 : index
    %12 = vector.load %arg4[%c0_10, %c0_11] : memref<128x512xbf16, #tpu.memory_space<vmem>>, vector<128x512xbf16>
    %c0_12 = arith.constant 0 : index
    %c0_13 = arith.constant 0 : index
    %13 = vector.load %arg7[%c0_12, %c0_13] : memref<16x128xf32, #tpu.memory_space<vmem>>, vector<16x128xf32>
    %c0_14 = arith.constant 0 : index
    %c0_15 = arith.constant 0 : index
    %14 = vector.load %arg8[%c0_14, %c0_15] : memref<16x128xf32, #tpu.memory_space<vmem>>, vector<16x128xf32>
    %c0_i32_16 = arith.constant 0 : i32
    %15 = arith.index_cast %c0_i32_16 : i32 to index
    %c0_17 = arith.constant 0 : index
    %c0_18 = arith.constant 0 : index
    %16 = vector.load %arg9[%15, %c0_17, %c0_18] : memref<8x16x512xf32, #tpu.memory_space<vmem>>, vector<1x16x512xf32>
    %17 = vector.shape_cast %16 : vector<1x16x512xf32> to vector<16x512xf32>
    %18 = arith.truncf %13 : vector<16x128xf32> to vector<16x128xbf16>
    %cst_19 = arith.constant dense<0.000000e+00> : vector<16x512xf32>
    %19 = tpu.matmul %18, %12, %cst_19 {dimension_numbers = #tpu.dot_dimension_numbers<[1], [0], [0], [1], [0, 0, 1, 1], [], []>} : vector<16x128xbf16>, vector<128x512xbf16>, vector<16x512xf32> -> vector<16x512xf32>
    %20 = arith.addf %17, %19 : vector<16x512xf32>
    %21 = vector.extract_strided_slice %20 {offsets = [0, 0], sizes = [16, 128], strides = [1, 1]} : vector<16x512xf32> to vector<16x128xf32>
    %22 = arith.negf %21 : vector<16x128xf32>
    %23 = math.exp %22 : vector<16x128xf32>
    %cst_20 = arith.constant 1.000000e+00 : f32
    %24 = vector.broadcast %cst_20 : f32 to vector<16x128xf32>
    %25 = arith.addf %24, %23 : vector<16x128xf32>
    %26 = arith.divf %24, %25 : vector<16x128xf32>
    %27 = vector.extract_strided_slice %20 {offsets = [0, 128], sizes = [16, 128], strides = [1, 1]} : vector<16x512xf32> to vector<16x128xf32>
    %28 = arith.negf %27 : vector<16x128xf32>
    %29 = math.exp %28 : vector<16x128xf32>
    %cst_21 = arith.constant 1.000000e+00 : f32
    %30 = vector.broadcast %cst_21 : f32 to vector<16x128xf32>
    %31 = arith.addf %30, %29 : vector<16x128xf32>
    %32 = arith.divf %30, %31 : vector<16x128xf32>
    %33 = vector.extract_strided_slice %20 {offsets = [0, 256], sizes = [16, 128], strides = [1, 1]} : vector<16x512xf32> to vector<16x128xf32>
    %34 = math.tanh %33 : vector<16x128xf32>
    %35 = vector.extract_strided_slice %20 {offsets = [0, 384], sizes = [16, 128], strides = [1, 1]} : vector<16x512xf32> to vector<16x128xf32>
    %36 = arith.negf %35 : vector<16x128xf32>
    %37 = math.exp %36 : vector<16x128xf32>
    %cst_22 = arith.constant 1.000000e+00 : f32
    %38 = vector.broadcast %cst_22 : f32 to vector<16x128xf32>
    %39 = arith.addf %38, %37 : vector<16x128xf32>
    %40 = arith.divf %38, %39 : vector<16x128xf32>
    %41 = arith.mulf %32, %14 : vector<16x128xf32>
    %42 = arith.mulf %26, %34 : vector<16x128xf32>
    %43 = arith.addf %41, %42 : vector<16x128xf32>
    %44 = math.tanh %43 : vector<16x128xf32>
    %45 = arith.mulf %40, %44 : vector<16x128xf32>
    %46 = arith.truncf %45 : vector<16x128xf32> to vector<16x128xbf16>
    %47 = arith.index_cast %c0_i32_16 : i32 to index
    %c0_23 = arith.constant 0 : index
    %c0_24 = arith.constant 0 : index
    %48 = vector.load %arg6[%47, %c0_23, %c0_24] : memref<8x16x128xbf16, #tpu.memory_space<vmem>>, vector<1x16x128xbf16>
    %49 = vector.shape_cast %48 : vector<1x16x128xbf16> to vector<16x128xbf16>
    %50 = vector.shape_cast %46 : vector<16x128xbf16> to vector<1x16x128xbf16>
    tpu.vector_store %arg6[%47, %c0_23, %c0_24], %50 {strides = array<i32>} : memref<8x16x128xbf16, #tpu.memory_space<vmem>>, vector<1x16x128xbf16>,
    %c1_i32 = arith.constant 1 : i32
    %51 = arith.index_cast %c1_i32 : i32 to index
    %c0_25 = arith.constant 0 : index
    %c0_26 = arith.constant 0 : index
    %52 = vector.load %arg9[%51, %c0_25, %c0_26] : memref<8x16x512xf32, #tpu.memory_space<vmem>>, vector<1x16x512xf32>
    %53 = vector.shape_cast %52 : vector<1x16x512xf32> to vector<16x512xf32>
    %54 = arith.truncf %45 : vector<16x128xf32> to vector<16x128xbf16>
    %cst_27 = arith.constant dense<0.000000e+00> : vector<16x512xf32>
    %55 = tpu.matmul %54, %12, %cst_27 {dimension_numbers = #tpu.dot_dimension_numbers<[1], [0], [0], [1], [0, 0, 1, 1], [], []>} : vector<16x128xbf16>, vector<128x512xbf16>, vector<16x512xf32> -> vector<16x512xf32>
    %56 = arith.addf %53, %55 : vector<16x512xf32>
    %57 = vector.extract_strided_slice %56 {offsets = [0, 0], sizes = [16, 128], strides = [1, 1]} : vector<16x512xf32> to vector<16x128xf32>
    %58 = arith.negf %57 : vector<16x128xf32>
    %59 = math.exp %58 : vector<16x128xf32>
    %cst_28 = arith.constant 1.000000e+00 : f32
    %60 = vector.broadcast %cst_28 : f32 to vector<16x128xf32>
    %61 = arith.addf %60, %59 : vector<16x128xf32>
    %62 = arith.divf %60, %61 : vector<16x128xf32>
    %63 = vector.extract_strided_slice %56 {offsets = [0, 128], sizes = [16, 128], strides = [1, 1]} : vector<16x512xf32> to vector<16x128xf32>
    %64 = arith.negf %63 : vector<16x128xf32>
    %65 = math.exp %64 : vector<16x128xf32>
    %cst_29 = arith.constant 1.000000e+00 : f32
    %66 = vector.broadcast %cst_29 : f32 to vector<16x128xf32>
    %67 = arith.addf %66, %65 : vector<16x128xf32>
    %68 = arith.divf %66, %67 : vector<16x128xf32>
    %69 = vector.extract_strided_slice %56 {offsets = [0, 256], sizes = [16, 128], strides = [1, 1]} : vector<16x512xf32> to vector<16x128xf32>
    %70 = math.tanh %69 : vector<16x128xf32>
    %71 = vector.extract_strided_slice %56 {offsets = [0, 384], sizes = [16, 128], strides = [1, 1]} : vector<16x512xf32> to vector<16x128xf32>
    %72 = arith.negf %71 : vector<16x128xf32>
    %73 = math.exp %72 : vector<16x128xf32>
    %cst_30 = arith.constant 1.000000e+00 : f32
    %74 = vector.broadcast %cst_30 : f32 to vector<16x128xf32>
    %75 = arith.addf %74, %73 : vector<16x128xf32>
    %76 = arith.divf %74, %75 : vector<16x128xf32>
    %77 = arith.mulf %68, %43 : vector<16x128xf32>
    %78 = arith.mulf %62, %70 : vector<16x128xf32>
    %79 = arith.addf %77, %78 : vector<16x128xf32>
    %80 = math.tanh %79 : vector<16x128xf32>
    %81 = arith.mulf %76, %80 : vector<16x128xf32>
    %82 = arith.truncf %81 : vector<16x128xf32> to vector<16x128xbf16>
    %83 = arith.index_cast %c1_i32 : i32 to index
    %c0_31 = arith.constant 0 : index
    %c0_32 = arith.constant 0 : index
    %84 = vector.load %arg6[%83, %c0_31, %c0_32] : memref<8x16x128xbf16, #tpu.memory_space<vmem>>, vector<1x16x128xbf16>
    %85 = vector.shape_cast %84 : vector<1x16x128xbf16> to vector<16x128xbf16>
    %86 = vector.shape_cast %82 : vector<16x128xbf16> to vector<1x16x128xbf16>
    tpu.vector_store %arg6[%83, %c0_31, %c0_32], %86 {strides = array<i32>} : memref<8x16x128xbf16, #tpu.memory_space<vmem>>, vector<1x16x128xbf16>,
    %c2_i32 = arith.constant 2 : i32
    %87 = arith.index_cast %c2_i32 : i32 to index
    %c0_33 = arith.constant 0 : index
    %c0_34 = arith.constant 0 : index
    %88 = vector.load %arg9[%87, %c0_33, %c0_34] : memref<8x16x512xf32, #tpu.memory_space<vmem>>, vector<1x16x512xf32>
    %89 = vector.shape_cast %88 : vector<1x16x512xf32> to vector<16x512xf32>
    %90 = arith.truncf %81 : vector<16x128xf32> to vector<16x128xbf16>
    %cst_35 = arith.constant dense<0.000000e+00> : vector<16x512xf32>
    %91 = tpu.matmul %90, %12, %cst_35 {dimension_numbers = #tpu.dot_dimension_numbers<[1], [0], [0], [1], [0, 0, 1, 1], [], []>} : vector<16x128xbf16>, vector<128x512xbf16>, vector<16x512xf32> -> vector<16x512xf32>
    %92 = arith.addf %89, %91 : vector<16x512xf32>
    %93 = vector.extract_strided_slice %92 {offsets = [0, 0], sizes = [16, 128], strides = [1, 1]} : vector<16x512xf32> to vector<16x128xf32>
    %94 = arith.negf %93 : vector<16x128xf32>
    %95 = math.exp %94 : vector<16x128xf32>
    %cst_36 = arith.constant 1.000000e+00 : f32
    %96 = vector.broadcast %cst_36 : f32 to vector<16x128xf32>
    %97 = arith.addf %96, %95 : vector<16x128xf32>
    %98 = arith.divf %96, %97 : vector<16x128xf32>
    %99 = vector.extract_strided_slice %92 {offsets = [0, 128], sizes = [16, 128], strides = [1, 1]} : vector<16x512xf32> to vector<16x128xf32>
    %100 = arith.negf %99 : vector<16x128xf32>
    %101 = math.exp %100 : vector<16x128xf32>
    %cst_37 = arith.constant 1.000000e+00 : f32
    %102 = vector.broadcast %cst_37 : f32 to vector<16x128xf32>
    %103 = arith.addf %102, %101 : vector<16x128xf32>
    %104 = arith.divf %102, %103 : vector<16x128xf32>
    %105 = vector.extract_strided_slice %92 {offsets = [0, 256], sizes = [16, 128], strides = [1, 1]} : vector<16x512xf32> to vector<16x128xf32>
    %106 = math.tanh %105 : vector<16x128xf32>
    %107 = vector.extract_strided_slice %92 {offsets = [0, 384], sizes = [16, 128], strides = [1, 1]} : vector<16x512xf32> to vector<16x128xf32>
    %108 = arith.negf %107 : vector<16x128xf32>
    %109 = math.exp %108 : vector<16x128xf32>
    %cst_38 = arith.constant 1.000000e+00 : f32
    %110 = vector.broadcast %cst_38 : f32 to vector<16x128xf32>
    %111 = arith.addf %110, %109 : vector<16x128xf32>
    %112 = arith.divf %110, %111 : vector<16x128xf32>
    %113 = arith.mulf %104, %79 : vector<16x128xf32>
    %114 = arith.mulf %98, %106 : vector<16x128xf32>
    %115 = arith.addf %113, %114 : vector<16x128xf32>
    %116 = math.tanh %115 : vector<16x128xf32>
    %117 = arith.mulf %112, %116 : vector<16x128xf32>
    %118 = arith.truncf %117 : vector<16x128xf32> to vector<16x128xbf16>
    %119 = arith.index_cast %c2_i32 : i32 to index
    %c0_39 = arith.constant 0 : index
    %c0_40 = arith.constant 0 : index
    %120 = vector.load %arg6[%119, %c0_39, %c0_40] : memref<8x16x128xbf16, #tpu.memory_space<vmem>>, vector<1x16x128xbf16>
    %121 = vector.shape_cast %120 : vector<1x16x128xbf16> to vector<16x128xbf16>
    %122 = vector.shape_cast %118 : vector<16x128xbf16> to vector<1x16x128xbf16>
    tpu.vector_store %arg6[%119, %c0_39, %c0_40], %122 {strides = array<i32>} : memref<8x16x128xbf16, #tpu.memory_space<vmem>>, vector<1x16x128xbf16>,
    %c3_i32 = arith.constant 3 : i32
    %123 = arith.index_cast %c3_i32 : i32 to index
    %c0_41 = arith.constant 0 : index
    %c0_42 = arith.constant 0 : index
    %124 = vector.load %arg9[%123, %c0_41, %c0_42] : memref<8x16x512xf32, #tpu.memory_space<vmem>>, vector<1x16x512xf32>
    %125 = vector.shape_cast %124 : vector<1x16x512xf32> to vector<16x512xf32>
    %126 = arith.truncf %117 : vector<16x128xf32> to vector<16x128xbf16>
    %cst_43 = arith.constant dense<0.000000e+00> : vector<16x512xf32>
    %127 = tpu.matmul %126, %12, %cst_43 {dimension_numbers = #tpu.dot_dimension_numbers<[1], [0], [0], [1], [0, 0, 1, 1], [], []>} : vector<16x128xbf16>, vector<128x512xbf16>, vector<16x512xf32> -> vector<16x512xf32>
    %128 = arith.addf %125, %127 : vector<16x512xf32>
    %129 = vector.extract_strided_slice %128 {offsets = [0, 0], sizes = [16, 128], strides = [1, 1]} : vector<16x512xf32> to vector<16x128xf32>
    %130 = arith.negf %129 : vector<16x128xf32>
    %131 = math.exp %130 : vector<16x128xf32>
    %cst_44 = arith.constant 1.000000e+00 : f32
    %132 = vector.broadcast %cst_44 : f32 to vector<16x128xf32>
    %133 = arith.addf %132, %131 : vector<16x128xf32>
    %134 = arith.divf %132, %133 : vector<16x128xf32>
    %135 = vector.extract_strided_slice %128 {offsets = [0, 128], sizes = [16, 128], strides = [1, 1]} : vector<16x512xf32> to vector<16x128xf32>
    %136 = arith.negf %135 : vector<16x128xf32>
    %137 = math.exp %136 : vector<16x128xf32>
    %cst_45 = arith.constant 1.000000e+00 : f32
    %138 = vector.broadcast %cst_45 : f32 to vector<16x128xf32>
    %139 = arith.addf %138, %137 : vector<16x128xf32>
    %140 = arith.divf %138, %139 : vector<16x128xf32>
    %141 = vector.extract_strided_slice %128 {offsets = [0, 256], sizes = [16, 128], strides = [1, 1]} : vector<16x512xf32> to vector<16x128xf32>
    %142 = math.tanh %141 : vector<16x128xf32>
    %143 = vector.extract_strided_slice %128 {offsets = [0, 384], sizes = [16, 128], strides = [1, 1]} : vector<16x512xf32> to vector<16x128xf32>
    %144 = arith.negf %143 : vector<16x128xf32>
    %145 = math.exp %144 : vector<16x128xf32>
    %cst_46 = arith.constant 1.000000e+00 : f32
    %146 = vector.broadcast %cst_46 : f32 to vector<16x128xf32>
    %147 = arith.addf %146, %145 : vector<16x128xf32>
    %148 = arith.divf %146, %147 : vector<16x128xf32>
    %149 = arith.mulf %140, %115 : vector<16x128xf32>
    %150 = arith.mulf %134, %142 : vector<16x128xf32>
    %151 = arith.addf %149, %150 : vector<16x128xf32>
    %152 = math.tanh %151 : vector<16x128xf32>
    %153 = arith.mulf %148, %152 : vector<16x128xf32>
    %154 = arith.truncf %153 : vector<16x128xf32> to vector<16x128xbf16>
    %155 = arith.index_cast %c3_i32 : i32 to index
    %c0_47 = arith.constant 0 : index
    %c0_48 = arith.constant 0 : index
    %156 = vector.load %arg6[%155, %c0_47, %c0_48] : memref<8x16x128xbf16, #tpu.memory_space<vmem>>, vector<1x16x128xbf16>
    %157 = vector.shape_cast %156 : vector<1x16x128xbf16> to vector<16x128xbf16>
    %158 = vector.shape_cast %154 : vector<16x128xbf16> to vector<1x16x128xbf16>
    tpu.vector_store %arg6[%155, %c0_47, %c0_48], %158 {strides = array<i32>} : memref<8x16x128xbf16, #tpu.memory_space<vmem>>, vector<1x16x128xbf16>,
    %c4_i32 = arith.constant 4 : i32
    %159 = arith.index_cast %c4_i32 : i32 to index
    %c0_49 = arith.constant 0 : index
    %c0_50 = arith.constant 0 : index
    %160 = vector.load %arg9[%159, %c0_49, %c0_50] : memref<8x16x512xf32, #tpu.memory_space<vmem>>, vector<1x16x512xf32>
    %161 = vector.shape_cast %160 : vector<1x16x512xf32> to vector<16x512xf32>
    %162 = arith.truncf %153 : vector<16x128xf32> to vector<16x128xbf16>
    %cst_51 = arith.constant dense<0.000000e+00> : vector<16x512xf32>
    %163 = tpu.matmul %162, %12, %cst_51 {dimension_numbers = #tpu.dot_dimension_numbers<[1], [0], [0], [1], [0, 0, 1, 1], [], []>} : vector<16x128xbf16>, vector<128x512xbf16>, vector<16x512xf32> -> vector<16x512xf32>
    %164 = arith.addf %161, %163 : vector<16x512xf32>
    %165 = vector.extract_strided_slice %164 {offsets = [0, 0], sizes = [16, 128], strides = [1, 1]} : vector<16x512xf32> to vector<16x128xf32>
    %166 = arith.negf %165 : vector<16x128xf32>
    %167 = math.exp %166 : vector<16x128xf32>
    %cst_52 = arith.constant 1.000000e+00 : f32
    %168 = vector.broadcast %cst_52 : f32 to vector<16x128xf32>
    %169 = arith.addf %168, %167 : vector<16x128xf32>
    %170 = arith.divf %168, %169 : vector<16x128xf32>
    %171 = vector.extract_strided_slice %164 {offsets = [0, 128], sizes = [16, 128], strides = [1, 1]} : vector<16x512xf32> to vector<16x128xf32>
    %172 = arith.negf %171 : vector<16x128xf32>
    %173 = math.exp %172 : vector<16x128xf32>
    %cst_53 = arith.constant 1.000000e+00 : f32
    %174 = vector.broadcast %cst_53 : f32 to vector<16x128xf32>
    %175 = arith.addf %174, %173 : vector<16x128xf32>
    %176 = arith.divf %174, %175 : vector<16x128xf32>
    %177 = vector.extract_strided_slice %164 {offsets = [0, 256], sizes = [16, 128], strides = [1, 1]} : vector<16x512xf32> to vector<16x128xf32>
    %178 = math.tanh %177 : vector<16x128xf32>
    %179 = vector.extract_strided_slice %164 {offsets = [0, 384], sizes = [16, 128], strides = [1, 1]} : vector<16x512xf32> to vector<16x128xf32>
    %180 = arith.negf %179 : vector<16x128xf32>
    %181 = math.exp %180 : vector<16x128xf32>
    %cst_54 = arith.constant 1.000000e+00 : f32
    %182 = vector.broadcast %cst_54 : f32 to vector<16x128xf32>
    %183 = arith.addf %182, %181 : vector<16x128xf32>
    %184 = arith.divf %182, %183 : vector<16x128xf32>
    %185 = arith.mulf %176, %151 : vector<16x128xf32>
    %186 = arith.mulf %170, %178 : vector<16x128xf32>
    %187 = arith.addf %185, %186 : vector<16x128xf32>
    %188 = math.tanh %187 : vector<16x128xf32>
    %189 = arith.mulf %184, %188 : vector<16x128xf32>
    %190 = arith.truncf %189 : vector<16x128xf32> to vector<16x128xbf16>
    %191 = arith.index_cast %c4_i32 : i32 to index
    %c0_55 = arith.constant 0 : index
    %c0_56 = arith.constant 0 : index
    %192 = vector.load %arg6[%191, %c0_55, %c0_56] : memref<8x16x128xbf16, #tpu.memory_space<vmem>>, vector<1x16x128xbf16>
    %193 = vector.shape_cast %192 : vector<1x16x128xbf16> to vector<16x128xbf16>
    %194 = vector.shape_cast %190 : vector<16x128xbf16> to vector<1x16x128xbf16>
    tpu.vector_store %arg6[%191, %c0_55, %c0_56], %194 {strides = array<i32>} : memref<8x16x128xbf16, #tpu.memory_space<vmem>>, vector<1x16x128xbf16>,
    %c5_i32 = arith.constant 5 : i32
    %195 = arith.index_cast %c5_i32 : i32 to index
    %c0_57 = arith.constant 0 : index
    %c0_58 = arith.constant 0 : index
    %196 = vector.load %arg9[%195, %c0_57, %c0_58] : memref<8x16x512xf32, #tpu.memory_space<vmem>>, vector<1x16x512xf32>
    %197 = vector.shape_cast %196 : vector<1x16x512xf32> to vector<16x512xf32>
    %198 = arith.truncf %189 : vector<16x128xf32> to vector<16x128xbf16>
    %cst_59 = arith.constant dense<0.000000e+00> : vector<16x512xf32>
    %199 = tpu.matmul %198, %12, %cst_59 {dimension_numbers = #tpu.dot_dimension_numbers<[1], [0], [0], [1], [0, 0, 1, 1], [], []>} : vector<16x128xbf16>, vector<128x512xbf16>, vector<16x512xf32> -> vector<16x512xf32>
    %200 = arith.addf %197, %199 : vector<16x512xf32>
    %201 = vector.extract_strided_slice %200 {offsets = [0, 0], sizes = [16, 128], strides = [1, 1]} : vector<16x512xf32> to vector<16x128xf32>
    %202 = arith.negf %201 : vector<16x128xf32>
    %203 = math.exp %202 : vector<16x128xf32>
    %cst_60 = arith.constant 1.000000e+00 : f32
    %204 = vector.broadcast %cst_60 : f32 to vector<16x128xf32>
    %205 = arith.addf %204, %203 : vector<16x128xf32>
    %206 = arith.divf %204, %205 : vector<16x128xf32>
    %207 = vector.extract_strided_slice %200 {offsets = [0, 128], sizes = [16, 128], strides = [1, 1]} : vector<16x512xf32> to vector<16x128xf32>
    %208 = arith.negf %207 : vector<16x128xf32>
    %209 = math.exp %208 : vector<16x128xf32>
    %cst_61 = arith.constant 1.000000e+00 : f32
    %210 = vector.broadcast %cst_61 : f32 to vector<16x128xf32>
    %211 = arith.addf %210, %209 : vector<16x128xf32>
    %212 = arith.divf %210, %211 : vector<16x128xf32>
    %213 = vector.extract_strided_slice %200 {offsets = [0, 256], sizes = [16, 128], strides = [1, 1]} : vector<16x512xf32> to vector<16x128xf32>
    %214 = math.tanh %213 : vector<16x128xf32>
    %215 = vector.extract_strided_slice %200 {offsets = [0, 384], sizes = [16, 128], strides = [1, 1]} : vector<16x512xf32> to vector<16x128xf32>
    %216 = arith.negf %215 : vector<16x128xf32>
    %217 = math.exp %216 : vector<16x128xf32>
    %cst_62 = arith.constant 1.000000e+00 : f32
    %218 = vector.broadcast %cst_62 : f32 to vector<16x128xf32>
    %219 = arith.addf %218, %217 : vector<16x128xf32>
    %220 = arith.divf %218, %219 : vector<16x128xf32>
    %221 = arith.mulf %212, %187 : vector<16x128xf32>
    %222 = arith.mulf %206, %214 : vector<16x128xf32>
    %223 = arith.addf %221, %222 : vector<16x128xf32>
    %224 = math.tanh %223 : vector<16x128xf32>
    %225 = arith.mulf %220, %224 : vector<16x128xf32>
    %226 = arith.truncf %225 : vector<16x128xf32> to vector<16x128xbf16>
    %227 = arith.index_cast %c5_i32 : i32 to index
    %c0_63 = arith.constant 0 : index
    %c0_64 = arith.constant 0 : index
    %228 = vector.load %arg6[%227, %c0_63, %c0_64] : memref<8x16x128xbf16, #tpu.memory_space<vmem>>, vector<1x16x128xbf16>
    %229 = vector.shape_cast %228 : vector<1x16x128xbf16> to vector<16x128xbf16>
    %230 = vector.shape_cast %226 : vector<16x128xbf16> to vector<1x16x128xbf16>
    tpu.vector_store %arg6[%227, %c0_63, %c0_64], %230 {strides = array<i32>} : memref<8x16x128xbf16, #tpu.memory_space<vmem>>, vector<1x16x128xbf16>,
    %c6_i32 = arith.constant 6 : i32
    %231 = arith.index_cast %c6_i32 : i32 to index
    %c0_65 = arith.constant 0 : index
    %c0_66 = arith.constant 0 : index
    %232 = vector.load %arg9[%231, %c0_65, %c0_66] : memref<8x16x512xf32, #tpu.memory_space<vmem>>, vector<1x16x512xf32>
    %233 = vector.shape_cast %232 : vector<1x16x512xf32> to vector<16x512xf32>
    %234 = arith.truncf %225 : vector<16x128xf32> to vector<16x128xbf16>
    %cst_67 = arith.constant dense<0.000000e+00> : vector<16x512xf32>
    %235 = tpu.matmul %234, %12, %cst_67 {dimension_numbers = #tpu.dot_dimension_numbers<[1], [0], [0], [1], [0, 0, 1, 1], [], []>} : vector<16x128xbf16>, vector<128x512xbf16>, vector<16x512xf32> -> vector<16x512xf32>
    %236 = arith.addf %233, %235 : vector<16x512xf32>
    %237 = vector.extract_strided_slice %236 {offsets = [0, 0], sizes = [16, 128], strides = [1, 1]} : vector<16x512xf32> to vector<16x128xf32>
    %238 = arith.negf %237 : vector<16x128xf32>
    %239 = math.exp %238 : vector<16x128xf32>
    %cst_68 = arith.constant 1.000000e+00 : f32
    %240 = vector.broadcast %cst_68 : f32 to vector<16x128xf32>
    %241 = arith.addf %240, %239 : vector<16x128xf32>
    %242 = arith.divf %240, %241 : vector<16x128xf32>
    %243 = vector.extract_strided_slice %236 {offsets = [0, 128], sizes = [16, 128], strides = [1, 1]} : vector<16x512xf32> to vector<16x128xf32>
    %244 = arith.negf %243 : vector<16x128xf32>
    %245 = math.exp %244 : vector<16x128xf32>
    %cst_69 = arith.constant 1.000000e+00 : f32
    %246 = vector.broadcast %cst_69 : f32 to vector<16x128xf32>
    %247 = arith.addf %246, %245 : vector<16x128xf32>
    %248 = arith.divf %246, %247 : vector<16x128xf32>
    %249 = vector.extract_strided_slice %236 {offsets = [0, 256], sizes = [16, 128], strides = [1, 1]} : vector<16x512xf32> to vector<16x128xf32>
    %250 = math.tanh %249 : vector<16x128xf32>
    %251 = vector.extract_strided_slice %236 {offsets = [0, 384], sizes = [16, 128], strides = [1, 1]} : vector<16x512xf32> to vector<16x128xf32>
    %252 = arith.negf %251 : vector<16x128xf32>
    %253 = math.exp %252 : vector<16x128xf32>
    %cst_70 = arith.constant 1.000000e+00 : f32
    %254 = vector.broadcast %cst_70 : f32 to vector<16x128xf32>
    %255 = arith.addf %254, %253 : vector<16x128xf32>
    %256 = arith.divf %254, %255 : vector<16x128xf32>
    %257 = arith.mulf %248, %223 : vector<16x128xf32>
    %258 = arith.mulf %242, %250 : vector<16x128xf32>
    %259 = arith.addf %257, %258 : vector<16x128xf32>
    %260 = math.tanh %259 : vector<16x128xf32>
    %261 = arith.mulf %256, %260 : vector<16x128xf32>
    %262 = arith.truncf %261 : vector<16x128xf32> to vector<16x128xbf16>
    %263 = arith.index_cast %c6_i32 : i32 to index
    %c0_71 = arith.constant 0 : index
    %c0_72 = arith.constant 0 : index
    %264 = vector.load %arg6[%263, %c0_71, %c0_72] : memref<8x16x128xbf16, #tpu.memory_space<vmem>>, vector<1x16x128xbf16>
    %265 = vector.shape_cast %264 : vector<1x16x128xbf16> to vector<16x128xbf16>
    %266 = vector.shape_cast %262 : vector<16x128xbf16> to vector<1x16x128xbf16>
    tpu.vector_store %arg6[%263, %c0_71, %c0_72], %266 {strides = array<i32>} : memref<8x16x128xbf16, #tpu.memory_space<vmem>>, vector<1x16x128xbf16>,
    %c7_i32 = arith.constant 7 : i32
    %267 = arith.index_cast %c7_i32 : i32 to index
    %c0_73 = arith.constant 0 : index
    %c0_74 = arith.constant 0 : index
    %268 = vector.load %arg9[%267, %c0_73, %c0_74] : memref<8x16x512xf32, #tpu.memory_space<vmem>>, vector<1x16x512xf32>
    %269 = vector.shape_cast %268 : vector<1x16x512xf32> to vector<16x512xf32>
    %270 = arith.truncf %261 : vector<16x128xf32> to vector<16x128xbf16>
    %cst_75 = arith.constant dense<0.000000e+00> : vector<16x512xf32>
    %271 = tpu.matmul %270, %12, %cst_75 {dimension_numbers = #tpu.dot_dimension_numbers<[1], [0], [0], [1], [0, 0, 1, 1], [], []>} : vector<16x128xbf16>, vector<128x512xbf16>, vector<16x512xf32> -> vector<16x512xf32>
    %272 = arith.addf %269, %271 : vector<16x512xf32>
    %273 = vector.extract_strided_slice %272 {offsets = [0, 0], sizes = [16, 128], strides = [1, 1]} : vector<16x512xf32> to vector<16x128xf32>
    %274 = arith.negf %273 : vector<16x128xf32>
    %275 = math.exp %274 : vector<16x128xf32>
    %cst_76 = arith.constant 1.000000e+00 : f32
    %276 = vector.broadcast %cst_76 : f32 to vector<16x128xf32>
    %277 = arith.addf %276, %275 : vector<16x128xf32>
    %278 = arith.divf %276, %277 : vector<16x128xf32>
    %279 = vector.extract_strided_slice %272 {offsets = [0, 128], sizes = [16, 128], strides = [1, 1]} : vector<16x512xf32> to vector<16x128xf32>
    %280 = arith.negf %279 : vector<16x128xf32>
    %281 = math.exp %280 : vector<16x128xf32>
    %cst_77 = arith.constant 1.000000e+00 : f32
    %282 = vector.broadcast %cst_77 : f32 to vector<16x128xf32>
    %283 = arith.addf %282, %281 : vector<16x128xf32>
    %284 = arith.divf %282, %283 : vector<16x128xf32>
    %285 = vector.extract_strided_slice %272 {offsets = [0, 256], sizes = [16, 128], strides = [1, 1]} : vector<16x512xf32> to vector<16x128xf32>
    %286 = math.tanh %285 : vector<16x128xf32>
    %287 = vector.extract_strided_slice %272 {offsets = [0, 384], sizes = [16, 128], strides = [1, 1]} : vector<16x512xf32> to vector<16x128xf32>
    %288 = arith.negf %287 : vector<16x128xf32>
    %289 = math.exp %288 : vector<16x128xf32>
    %cst_78 = arith.constant 1.000000e+00 : f32
    %290 = vector.broadcast %cst_78 : f32 to vector<16x128xf32>
    %291 = arith.addf %290, %289 : vector<16x128xf32>
    %292 = arith.divf %290, %291 : vector<16x128xf32>
    %293 = arith.mulf %284, %259 : vector<16x128xf32>
    %294 = arith.mulf %278, %286 : vector<16x128xf32>
    %295 = arith.addf %293, %294 : vector<16x128xf32>
    %296 = math.tanh %295 : vector<16x128xf32>
    %297 = arith.mulf %292, %296 : vector<16x128xf32>
    %298 = arith.truncf %297 : vector<16x128xf32> to vector<16x128xbf16>
    %299 = arith.index_cast %c7_i32 : i32 to index
    %c0_79 = arith.constant 0 : index
    %c0_80 = arith.constant 0 : index
    %300 = vector.load %arg6[%299, %c0_79, %c0_80] : memref<8x16x128xbf16, #tpu.memory_space<vmem>>, vector<1x16x128xbf16>
    %301 = vector.shape_cast %300 : vector<1x16x128xbf16> to vector<16x128xbf16>
    %302 = vector.shape_cast %298 : vector<16x128xbf16> to vector<1x16x128xbf16>
    tpu.vector_store %arg6[%299, %c0_79, %c0_80], %302 {strides = array<i32>} : memref<8x16x128xbf16, #tpu.memory_space<vmem>>, vector<1x16x128xbf16>,
    %c8_i32 = arith.constant 8 : i32
    %c0_81 = arith.constant 0 : index
    %c0_82 = arith.constant 0 : index
    %303 = vector.load %arg7[%c0_81, %c0_82] : memref<16x128xf32, #tpu.memory_space<vmem>>, vector<16x128xf32>
    tpu.vector_store %arg7[%c0_81, %c0_82], %297 {strides = array<i32>} : memref<16x128xf32, #tpu.memory_space<vmem>>, vector<16x128xf32>,
    %c0_83 = arith.constant 0 : index
    %c0_84 = arith.constant 0 : index
    %304 = vector.load %arg8[%c0_83, %c0_84] : memref<16x128xf32, #tpu.memory_space<vmem>>, vector<16x128xf32>
    tpu.vector_store %arg8[%c0_83, %c0_84], %295 {strides = array<i32>} : memref<16x128xf32, #tpu.memory_space<vmem>>, vector<16x128xf32>,
    return
  }
  func.func @transform_0(%arg0: i32, %arg1: i32) -> (i32, i32, i32) {
    %c0_i32 = arith.constant 0 : i32
    %c0_i32_0 = arith.constant 0 : i32
    return %arg1, %arg0, %c0_i32 : i32, i32, i32
  }
  func.func @transform_1(%arg0: i32, %arg1: i32) -> (i32, i32) {
    %c0_i32 = arith.constant 0 : i32
    %c0_i32_0 = arith.constant 0 : i32
    %c0_i32_1 = arith.constant 0 : i32
    return %c0_i32, %c0_i32_0 : i32, i32
  }
  func.func @transform_2(%arg0: i32, %arg1: i32) -> (i32, i32) {
    %c0_i32 = arith.constant 0 : i32
    %c0_i32_0 = arith.constant 0 : i32
    %c0_i32_1 = arith.constant 0 : i32
    return %c0_i32, %c0_i32_0 : i32, i32
  }
  func.func @transform_3(%arg0: i32, %arg1: i32) -> (i32, i32) {
    %c0_i32 = arith.constant 0 : i32
    %c0_i32_0 = arith.constant 0 : i32
    %c0_i32_1 = arith.constant 0 : i32
    return %c0_i32, %c0_i32_0 : i32, i32
  }
  func.func @transform_4(%arg0: i32, %arg1: i32) -> (i32, i32, i32) {
    %c0_i32 = arith.constant 0 : i32
    %c0_i32_0 = arith.constant 0 : i32
    return %arg1, %arg0, %c0_i32 : i32, i32, i32
  }
}

</mosaic_0001>

<llo_original>
// kernel: lstm_lm_forward.5
$region0: #{lstm_lm_forward.5}
  #allocation0 [shape = 'u32[]', space=smem, size = 0x4, offset = 0x4, fixed_abs, tag = 'smem constant byte address 0x4 - core index']
  #allocation1 [shape = 'u32[144,128]{1,0:T(1,128)}', space=vmem, size = 0x12000, scoped, tag = 'internal scratch']
  %s0 = inlined_call_operand.vmem [shape: bf16[128,128], index: 0, kind: input, shape index: {}]
  %s1 = inlined_call_operand.vmem [shape: bf16[128,128], index: 1, kind: input, shape index: {}]
  %s2 = inlined_call_operand.vmem [shape: f32[1,128], index: 2, kind: input, shape index: {}]
  %s3 = inlined_call_operand.vmem [shape: f32[128,128], index: 3, kind: output, shape index: {}]
  %s4 = sld [smem:[#allocation0]]
  $region22: #{lstm_lm_forward.5} parent=0
    _
  %s6 = ssub.s32 1, %s4
  %s7 = scalar_select 0, %s6, %s4
  // Predicated region
  $region2: #{lstm_lm_forward.5} parent=0 // pred_check
    _
  $region3: #{lstm_lm_forward.5} parent=0 // pred_check_branch
    %9 = sbr.rel (0) target = $region5
  $region4: #{lstm_lm_forward.5} parent=0 // pred_region
    _
  $region5: #{lstm_lm_forward.5} parent=0 // pred_fallthru
    _
  // Predicated region
  $region6: #{lstm_lm_forward.5} parent=0 // pred_check
    _
  $region7: #{lstm_lm_forward.5} parent=0 // pred_check_branch
    %11 = sbr.rel (0) target = $region9
  $region8: #{lstm_lm_forward.5} parent=0 // pred_region
    _
  $region9: #{lstm_lm_forward.5} parent=0 // pred_fallthru
    _
  // Predicated region
  $region10: #{lstm_lm_forward.5} parent=0 // pred_check
    _
  $region11: #{lstm_lm_forward.5} parent=0 // pred_check_branch
    %13 = sbr.rel (0) target = $region13
  $region12: #{lstm_lm_forward.5} parent=0 // pred_region
    _
  $region13: #{lstm_lm_forward.5} parent=0 // pred_fallthru
    _
  %v15 = vld [vmem:[%s0] sm:$0xf]
  %v16 = vld [vmem:[%s0 + $0x4] sm:$0xf]
  %v17 = vld [vmem:[%s0 + $0x8] sm:$0xf]
  %v18 = vld [vmem:[%s0 + $0xc] sm:$0xf]
  %v19 = vld [vmem:[%s0 + $0x10] sm:$0xf]
  %v20 = vld [vmem:[%s0 + $0x14] sm:$0xf]
  %v21 = vld [vmem:[%s0 + $0x18] sm:$0xf]
  %v22 = vld [vmem:[%s0 + $0x1c] sm:$0xf]
  %v23 = vld [vmem:[%s0 + $0x20] sm:$0xf]
  %v24 = vld [vmem:[%s0 + $0x24] sm:$0xf]
  %v25 = vld [vmem:[%s0 + $0x28] sm:$0xf]
  %v26 = vld [vmem:[%s0 + $0x2c] sm:$0xf]
  %v27 = vld [vmem:[%s0 + $0x30] sm:$0xf]
  %v28 = vld [vmem:[%s0 + $0x34] sm:$0xf]
  %v29 = vld [vmem:[%s0 + $0x38] sm:$0xf]
  %v30 = vld [vmem:[%s0 + $0x3c] sm:$0xf]
  %v31 = vld [vmem:[%s1] sm:$0xf]
  %v32 = vld [vmem:[%s1 + $0x4] sm:$0xf]
  %v33 = vld [vmem:[%s1 + $0x8] sm:$0xf]
  %v34 = vld [vmem:[%s1 + $0xc] sm:$0xf]
  %v35 = vld [vmem:[%s1 + $0x10] sm:$0xf]
  %v36 = vld [vmem:[%s1 + $0x14] sm:$0xf]
  %v37 = vld [vmem:[%s1 + $0x18] sm:$0xf]
  %v38 = vld [vmem:[%s1 + $0x1c] sm:$0xf]
  %v39 = vld [vmem:[%s1 + $0x20] sm:$0xf]
  %v40 = vld [vmem:[%s1 + $0x24] sm:$0xf]
  %v41 = vld [vmem:[%s1 + $0x28] sm:$0xf]
  %v42 = vld [vmem:[%s1 + $0x2c] sm:$0xf]
  %v43 = vld [vmem:[%s1 + $0x30] sm:$0xf]
  %v44 = vld [vmem:[%s1 + $0x34] sm:$0xf]
  %v45 = vld [vmem:[%s1 + $0x38] sm:$0xf]
  %v46 = vld [vmem:[%s1 + $0x3c] sm:$0xf]
  %v47 = vld [vmem:[%s2] sm:$0x1]
  %v49 = vlaneseq
  %v50 = vshrl.u32 %v49, 7
  %v51 = vsub.s32 0, %v50
  %v52 = vrot.slane %v47, %v51
  %v70 = vunpack.c.l.b16 %v15
  %v71 = vunpack.c.l.b16 %v16
  %v72 = vunpack.c.l.b16 %v17
  %v73 = vunpack.c.l.b16 %v18
  %v74 = vunpack.c.l.b16 %v19
  %v75 = vunpack.c.l.b16 %v20
  %v76 = vunpack.c.l.b16 %v21
  %v77 = vunpack.c.l.b16 %v22
  %v78 = vunpack.c.l.b16 %v23
  %v79 = vunpack.c.l.b16 %v24
  %v80 = vunpack.c.l.b16 %v25
  %v81 = vunpack.c.l.b16 %v26
  %v82 = vunpack.c.l.b16 %v27
  %v83 = vunpack.c.l.b16 %v28
  %v84 = vunpack.c.l.b16 %v29
  %v85 = vunpack.c.l.b16 %v30
  %v86 = vpack.c.b16 %v71, %v70
  %v87 = vpack.c.b16 %v73, %v72
  %v88 = vpack.c.b16 %v75, %v74
  %v89 = vpack.c.b16 %v77, %v76
  %v90 = vpack.c.b16 %v79, %v78
  %v91 = vpack.c.b16 %v81, %v80
  %v92 = vpack.c.b16 %v83, %v82
  %v93 = vpack.c.b16 %v85, %v84
  %v118 = vunpack.c.l.b16 %v31
  %v119 = vunpack.c.l.b16 %v32
  %v120 = vunpack.c.l.b16 %v33
  %v121 = vunpack.c.l.b16 %v34
  %v122 = vunpack.c.l.b16 %v35
  %v123 = vunpack.c.l.b16 %v36
  %v124 = vunpack.c.l.b16 %v37
  %v125 = vunpack.c.l.b16 %v38
  %v126 = vunpack.c.l.b16 %v39
  %v127 = vunpack.c.l.b16 %v40
  %v128 = vunpack.c.l.b16 %v41
  %v129 = vunpack.c.l.b16 %v42
  %v130 = vunpack.c.l.b16 %v43
  %v131 = vunpack.c.l.b16 %v44
  %v132 = vunpack.c.l.b16 %v45
  %v133 = vunpack.c.l.b16 %v46
  %v134 = vpack.c.b16 %v119, %v118
  %v135 = vpack.c.b16 %v121, %v120
  %v136 = vpack.c.b16 %v123, %v122
  %v137 = vpack.c.b16 %v125, %v124
  %v138 = vpack.c.b16 %v127, %v126
  %v139 = vpack.c.b16 %v129, %v128
  %v140 = vpack.c.b16 %v131, %v130
  %v141 = vpack.c.b16 %v133, %v132
  %150 = vmatprep.subr.bf16.mxu0 0
  %151 = vmatpush1.bf16.msra.mxu0 %v134
  %152 = vmatprep.subr.bf16.mxu0 0
  %153 = vmatpush1.bf16.msra.mxu0 %v135
  %154 = vmatprep.subr.bf16.mxu0 0
  %155 = vmatpush1.bf16.msra.mxu0 %v136
  %156 = vmatprep.subr.bf16.mxu0 0
  %157 = vmatpush1.bf16.msra.mxu0 %v137
  %158 = vmatprep.subr.bf16.mxu0 0
  %159 = vmatpush1.bf16.msra.mxu0 %v138
  %160 = vmatprep.subr.bf16.mxu0 0
  %161 = vmatpush1.bf16.msra.mxu0 %v139
  %162 = vmatprep.subr.bf16.mxu0 0
  %163 = vmatpush1.bf16.msra.mxu0 %v140
  %164 = vmatprep.subr.bf16.mxu0 0
  %165 = vmatpush1.bf16.msra.mxu0 %v141
  %166 = vmatprep.subr.bf16.mxu0 0
  %167 = vmatpush1.bf16.msra.mxu0 0
  %168 = vmatprep.subr.bf16.mxu0 0
  %169 = vmatpush1.bf16.msra.mxu0 0
  %170 = vmatprep.subr.bf16.mxu0 0
  %171 = vmatpush1.bf16.msra.mxu0 0
  %172 = vmatprep.subr.bf16.mxu0 0
  %173 = vmatpush1.bf16.msra.mxu0 0
  %174 = vmatprep.subr.bf16.mxu0 0
  %175 = vmatpush1.bf16.msra.mxu0 0
  %176 = vmatprep.subr.bf16.mxu0 0
  %177 = vmatpush1.bf16.msra.mxu0 0
  %178 = vmatprep.subr.bf16.mxu0 0
  %179 = vmatpush1.bf16.msra.mxu0 0
  %180 = vmatprep.subr.bf16.mxu0 0
  %181 = vmatpush1.bf16.msra.mxu0 0
  %182 = vmatprep.mubr.bf16.mxu0 0
  %183 = vmatmul.mubr.bf16.gmra.mrb[0].mxu0 %v86
  %v184 = vpop.f32.mrb[0].mxu0
  %v185 = vadd.f32 %v52, %v184
  %v186 = vpop.f32.mrb[0].mxu0
  %v187 = vpop.f32.mrb[0].mxu0
  %v188 = vadd.f32 %v52, %v187
  %v189 = vpop.f32.mrb[0].mxu0
  %190 = vmatprep.mubr.bf16.mxu0 0
  %191 = vmatmul.mubr.bf16.gmra.mrb[0].mxu0 %v87
  %v192 = vpop.f32.mrb[0].mxu0
  %v193 = vadd.f32 %v52, %v192
  %v194 = vpop.f32.mrb[0].mxu0
  %v195 = vpop.f32.mrb[0].mxu0
  %v196 = vadd.f32 %v52, %v195
  %v197 = vpop.f32.mrb[0].mxu0
  %198 = vmatprep.mubr.bf16.mxu0 0
  %199 = vmatmul.mubr.bf16.gmra.mrb[0].mxu0 %v88
  %v200 = vpop.f32.mrb[0].mxu0
  %v201 = vadd.f32 %v52, %v200
  %v202 = vpop.f32.mrb[0].mxu0
  %v203 = vpop.f32.mrb[0].mxu0
  %v204 = vadd.f32 %v52, %v203
  %v205 = vpop.f32.mrb[0].mxu0
  %206 = vmatprep.mubr.bf16.mxu0 0
  %207 = vmatmul.mubr.bf16.gmra.mrb[0].mxu0 %v89
  %v208 = vpop.f32.mrb[0].mxu0
  %v209 = vadd.f32 %v52, %v208
  %v210 = vpop.f32.mrb[0].mxu0
  %v211 = vpop.f32.mrb[0].mxu0
  %v212 = vadd.f32 %v52, %v211
  %v213 = vpop.f32.mrb[0].mxu0
  %214 = vmatprep.mubr.bf16.mxu0 0
  %215 = vmatmul.mubr.bf16.gmra.mrb[0].mxu0 %v90
  %v216 = vpop.f32.mrb[0].mxu0
  %v217 = vadd.f32 %v52, %v216
  %v218 = vpop.f32.mrb[0].mxu0
  %v219 = vpop.f32.mrb[0].mxu0
  %v220 = vadd.f32 %v52, %v219
  %v221 = vpop.f32.mrb[0].mxu0
  %222 = vmatprep.mubr.bf16.mxu0 0
  %223 = vmatmul.mubr.bf16.gmra.mrb[0].mxu0 %v91
  %v224 = vpop.f32.mrb[0].mxu0
  %v225 = vadd.f32 %v52, %v224
  %v226 = vpop.f32.mrb[0].mxu0
  %v227 = vpop.f32.mrb[0].mxu0
  %v228 = vadd.f32 %v52, %v227
  %v229 = vpop.f32.mrb[0].mxu0
  %230 = vmatprep.mubr.bf16.mxu0 0
  %231 = vmatmul.mubr.bf16.gmra.mrb[0].mxu0 %v92
  %v232 = vpop.f32.mrb[0].mxu0
  %v233 = vadd.f32 %v52, %v232
  %v234 = vpop.f32.mrb[0].mxu0
  %v235 = vpop.f32.mrb[0].mxu0
  %v236 = vadd.f32 %v52, %v235
  %v237 = vpop.f32.mrb[0].mxu0
  %238 = vmatprep.mubr.bf16.mxu0 0
  %239 = vmatmul.mubr.bf16.gmra.mrb[0].mxu0 %v93
  %v240 = vpop.f32.mrb[0].mxu0
  %v241 = vadd.f32 %v52, %v240
  %v242 = vpop.f32.mrb[0].mxu0
  %v243 = vpop.f32.mrb[0].mxu0
  %v244 = vadd.f32 %v52, %v243
  %v245 = vpop.f32.mrb[0].mxu0
  %246 = vdwg.mxu0
  %247 = vst [vmem:[%s3] sm:$0xff] %v185
  %248 = vst [vmem:[%s3 + $0x8] sm:$0xff] %v188
  %249 = vst [vmem:[%s3 + $0x10] sm:$0xff] %v193
  %250 = vst [vmem:[%s3 + $0x18] sm:$0xff] %v196
  %251 = vst [vmem:[%s3 + $0x20] sm:$0xff] %v201
  %252 = vst [vmem:[%s3 + $0x28] sm:$0xff] %v204
  %253 = vst [vmem:[%s3 + $0x30] sm:$0xff] %v209
  %254 = vst [vmem:[%s3 + $0x38] sm:$0xff] %v212
  %255 = vst [vmem:[%s3 + $0x40] sm:$0xff] %v217
  %256 = vst [vmem:[%s3 + $0x48] sm:$0xff] %v220
  %257 = vst [vmem:[%s3 + $0x50] sm:$0xff] %v225
  %258 = vst [vmem:[%s3 + $0x58] sm:$0xff] %v228
  %259 = vst [vmem:[%s3 + $0x60] sm:$0xff] %v233
  %260 = vst [vmem:[%s3 + $0x68] sm:$0xff] %v236
  %261 = vst [vmem:[%s3 + $0x70] sm:$0xff] %v241
  %262 = vst [vmem:[%s3 + $0x78] sm:$0xff] %v244
  // Predicated region
  $region14: #{lstm_lm_forward.5} parent=0 // pred_check
    _
  $region15: #{lstm_lm_forward.5} parent=0 // pred_check_branch
    %264 = sbr.rel (0) target = $region17
  $region16: #{lstm_lm_forward.5} parent=0 // pred_region
    _
  $region17: #{lstm_lm_forward.5} parent=0 // pred_fallthru
    _
  // Predicated region
  $region18: #{lstm_lm_forward.5} parent=0 // pred_check
    _
  $region19: #{lstm_lm_forward.5} parent=0 // pred_check_branch
    %266 = sbr.rel (0) target = $region21
  $region20: #{lstm_lm_forward.5} parent=0 // pred_region
    _
  $region21: #{lstm_lm_forward.5} parent=0 // pred_fallthru
    _

// kernel: lstm_lm_forward.3
$region0: #{lstm_lm_forward.3}
  #allocation0 [shape = 'u32[]', space=smem, size = 0x4, offset = 0x4, fixed_abs, tag = 'smem constant byte address 0x4 - core index']
  #allocation1 [shape = 'u32[144,128]{1,0:T(1,128)}', space=vmem, size = 0x12000, scoped, tag = 'internal scratch']
  #allocation2 [shape = 'f32[16,128]{1,0:T(8,128)}', space=vmem, size = 0x2000, scoped, tag = 'scratch operand']
  #allocation3 [shape = 'f32[16,128]{1,0:T(8,128)}', space=vmem, size = 0x2000, scoped, tag = 'scratch operand']
  #allocation4 [shape = 'f32[8,16,512]{2,1,0:T(8,128)}', space=vmem, size = 0x40000, scoped, tag = 'scratch operand']
  %s0 = inlined_call_operand.vmem [shape: bf16[8,16,128], index: 0, kind: input, shape index: {}]
  %s1 = inlined_call_operand.vmem [shape: bf16[128,512], index: 1, kind: input, shape index: {}]
  %s2 = inlined_call_operand.vmem [shape: bf16[128,512], index: 2, kind: input, shape index: {}]
  %s3 = inlined_call_operand.vmem [shape: f32[1,512], index: 3, kind: input, shape index: {}]
  %s4 = inlined_call_operand.vmem [shape: bf16[8,16,128], index: 4, kind: output, shape index: {}]
  %s5 = sld [smem:[#allocation0]]
  $region30: #{lstm_lm_forward.3} parent=0
    _
  %s7 = ssub.s32 1, %s5
  %s8 = scalar_select 0, %s7, %s5
  // Predicated region
  $region2: #{lstm_lm_forward.3} parent=0 // pred_check
    _
  $region3: #{lstm_lm_forward.3} parent=0 // pred_check_branch
    %10 = sbr.rel (0) target = $region5
  $region4: #{lstm_lm_forward.3} parent=0 // pred_region
    _
  $region5: #{lstm_lm_forward.3} parent=0 // pred_fallthru
    _
  // Predicated region
  $region6: #{lstm_lm_forward.3} parent=0 // pred_check
    _
  $region7: #{lstm_lm_forward.3} parent=0 // pred_check_branch
    %12 = sbr.rel (0) target = $region9
  $region8: #{lstm_lm_forward.3} parent=0 // pred_region
    _
  $region9: #{lstm_lm_forward.3} parent=0 // pred_fallthru
    _
  // Predicated region
  $region10: #{lstm_lm_forward.3} parent=0 // pred_check
    _
  $region11: #{lstm_lm_forward.3} parent=0 // pred_check_branch
    %14 = sbr.rel (0) target = $region13
  $region12: #{lstm_lm_forward.3} parent=0 // pred_region
    _
  $region13: #{lstm_lm_forward.3} parent=0 // pred_fallthru
    _
  // Predicated region
  $region14: #{lstm_lm_forward.3} parent=0 // pred_check
    _
  $region15: #{lstm_lm_forward.3} parent=0 // pred_check_branch
    %16 = sbr.rel (0) target = $region17
  $region16: #{lstm_lm_forward.3} parent=0 // pred_region
    _
  $region17: #{lstm_lm_forward.3} parent=0 // pred_fallthru
    _
  %p18 = scmp.eq.s32.totalorder 0, 0
  // Predicated region
  $region18: #{lstm_lm_forward.3} parent=0 // pred_check
    %p19 = pneg %p18
  $region19: #{lstm_lm_forward.3} parent=0 // pred_check_branch
    %21 = sbr.rel (%p19) target = $region21
  $region20: #{lstm_lm_forward.3} parent=0 // pred_region
    %22 = vst [vmem:[#allocation2] sm:$0xff] 0.0
    %23 = vst [vmem:[#allocation2 + $0x8] sm:$0xff] 0.0
    %24 = vst [vmem:[#allocation3] sm:$0xff] 0.0
    %25 = vst [vmem:[#allocation3 + $0x8] sm:$0xff] 0.0
  $region21: #{lstm_lm_forward.3} parent=0 // pred_fallthru
    _
  %v26 = vld [vmem:[%s0] sm:$0xf]
  %v27 = vld [vmem:[%s0 + $0x4] sm:$0xf]
  %v28 = vld [vmem:[%s0 + $0x8] sm:$0xf]
  %v29 = vld [vmem:[%s0 + $0xc] sm:$0xf]
  %v30 = vld [vmem:[%s0 + $0x10] sm:$0xf]
  %v31 = vld [vmem:[%s0 + $0x14] sm:$0xf]
  %v32 = vld [vmem:[%s0 + $0x18] sm:$0xf]
  %v33 = vld [vmem:[%s0 + $0x1c] sm:$0xf]
  %v34 = vld [vmem:[%s0 + $0x20] sm:$0xf]
  %v35 = vld [vmem:[%s0 + $0x24] sm:$0xf]
  %v36 = vld [vmem:[%s0 + $0x28] sm:$0xf]
  %v37 = vld [vmem:[%s0 + $0x2c] sm:$0xf]
  %v38 = vld [vmem:[%s0 + $0x30] sm:$0xf]
  %v39 = vld [vmem:[%s0 + $0x34] sm:$0xf]
  %v40 = vld [vmem:[%s0 + $0x38] sm:$0xf]
  %v41 = vld [vmem:[%s0 + $0x3c] sm:$0xf]
  %v42 = vld [vmem:[%s1] sm:$0xff]
  %v43 = vld [vmem:[%s1 + $0x8] sm:$0xff]
  %v44 = vld [vmem:[%s1 + $0x10] sm:$0xff]
  %v45 = vld [vmem:[%s1 + $0x18] sm:$0xff]
  %v46 = vld [vmem:[%s1 + $0x20] sm:$0xff]
  %v47 = vld [vmem:[%s1 + $0x28] sm:$0xff]
  %v48 = vld [vmem:[%s1 + $0x30] sm:$0xff]
  %v49 = vld [vmem:[%s1 + $0x38] sm:$0xff]
  %v50 = vld [vmem:[%s1 + $0x40] sm:$0xff]
  %v51 = vld [vmem:[%s1 + $0x48] sm:$0xff]
  %v52 = vld [vmem:[%s1 + $0x50] sm:$0xff]
  %v53 = vld [vmem:[%s1 + $0x58] sm:$0xff]
  %v54 = vld [vmem:[%s1 + $0x60] sm:$0xff]
  %v55 = vld [vmem:[%s1 + $0x68] sm:$0xff]
  %v56 = vld [vmem:[%s1 + $0x70] sm:$0xff]
  %v57 = vld [vmem:[%s1 + $0x78] sm:$0xff]
  %v58 = vld [vmem:[%s1 + $0x80] sm:$0xff]
  %v59 = vld [vmem:[%s1 + $0x88] sm:$0xff]
  %v60 = vld [vmem:[%s1 + $0x90] sm:$0xff]
  %v61 = vld [vmem:[%s1 + $0x98] sm:$0xff]
  %v62 = vld [vmem:[%s1 + $0xa0] sm:$0xff]
  %v63 = vld [vmem:[%s1 + $0xa8] sm:$0xff]
  %v64 = vld [vmem:[%s1 + $0xb0] sm:$0xff]
  %v65 = vld [vmem:[%s1 + $0xb8] sm:$0xff]
  %v66 = vld [vmem:[%s1 + $0xc0] sm:$0xff]
  %v67 = vld [vmem:[%s1 + $0xc8] sm:$0xff]
  %v68 = vld [vmem:[%s1 + $0xd0] sm:$0xff]
  %v69 = vld [vmem:[%s1 + $0xd8] sm:$0xff]
  %v70 = vld [vmem:[%s1 + $0xe0] sm:$0xff]
  %v71 = vld [vmem:[%s1 + $0xe8] sm:$0xff]
  %v72 = vld [vmem:[%s1 + $0xf0] sm:$0xff]
  %v73 = vld [vmem:[%s1 + $0xf8] sm:$0xff]
  %v74 = vld [vmem:[%s3] sm:$0xf]
  %v76 = vlaneseq
  %v77 = vshrl.u32 %v76, 7
  %v78 = vsub.s32 0, %v77
  %v79 = vrot.slane %v74, %v78
  %v80 = vlaneseq
  %v81 = vshrl.u32 %v80, 7
  %v82 = vsub.s32 1, %v81
  %v83 = vrot.slane %v74, %v82
  %v84 = vlaneseq
  %v85 = vshrl.u32 %v84, 7
  %v86 = vsub.s32 2, %v85
  %v87 = vrot.slane %v74, %v86
  %v88 = vlaneseq
  %v89 = vshrl.u32 %v88, 7
  %v90 = vsub.s32 3, %v89
  %v91 = vrot.slane %v74, %v90
  %v112 = vunpack.c.l.b16 %v26
  %v113 = vunpack.c.l.b16 %v27
  %v114 = vunpack.c.l.b16 %v28
  %v115 = vunpack.c.l.b16 %v29
  %v116 = vunpack.c.l.b16 %v30
  %v117 = vunpack.c.l.b16 %v31
  %v118 = vunpack.c.l.b16 %v32
  %v119 = vunpack.c.l.b16 %v33
  %v120 = vunpack.c.l.b16 %v34
  %v121 = vunpack.c.l.b16 %v35
  %v122 = vunpack.c.l.b16 %v36
  %v123 = vunpack.c.l.b16 %v37
  %v124 = vunpack.c.l.b16 %v38
  %v125 = vunpack.c.l.b16 %v39
  %v126 = vunpack.c.l.b16 %v40
  %v127 = vunpack.c.l.b16 %v41
  %v128 = vpack.c.b16 %v113, %v112
  %v129 = vpack.c.b16 %v115, %v114
  %v130 = vpack.c.b16 %v117, %v116
  %v131 = vpack.c.b16 %v119, %v118
  %v132 = vpack.c.b16 %v121, %v120
  %v133 = vpack.c.b16 %v123, %v122
  %v134 = vpack.c.b16 %v125, %v124
  %v135 = vpack.c.b16 %v127, %v126
  %v176 = vunpack.c.l.b16 %v42
  %v177 = vunpack.c.h.b16 %v42
  %v178 = vunpack.c.l.b16 %v43
  %v179 = vunpack.c.h.b16 %v43
  %v180 = vunpack.c.l.b16 %v44
  %v181 = vunpack.c.h.b16 %v44
  %v182 = vunpack.c.l.b16 %v45
  %v183 = vunpack.c.h.b16 %v45
  %v184 = vunpack.c.l.b16 %v46
  %v185 = vunpack.c.h.b16 %v46
  %v186 = vunpack.c.l.b16 %v47
  %v187 = vunpack.c.h.b16 %v47
  %v188 = vunpack.c.l.b16 %v48
  %v189 = vunpack.c.h.b16 %v48
  %v190 = vunpack.c.l.b16 %v49
  %v191 = vunpack.c.h.b16 %v49
  %v192 = vunpack.c.l.b16 %v50
  %v193 = vunpack.c.h.b16 %v50
  %v194 = vunpack.c.l.b16 %v51
  %v195 = vunpack.c.h.b16 %v51
  %v196 = vunpack.c.l.b16 %v52
  %v197 = vunpack.c.h.b16 %v52
  %v198 = vunpack.c.l.b16 %v53
  %v199 = vunpack.c.h.b16 %v53
  %v200 = vunpack.c.l.b16 %v54
  %v201 = vunpack.c.h.b16 %v54
  %v202 = vunpack.c.l.b16 %v55
  %v203 = vunpack.c.h.b16 %v55
  %v204 = vunpack.c.l.b16 %v56
  %v205 = vunpack.c.h.b16 %v56
  %v206 = vunpack.c.l.b16 %v57
  %v207 = vunpack.c.h.b16 %v57
  %v208 = vunpack.c.l.b16 %v58
  %v209 = vunpack.c.h.b16 %v58
  %v210 = vunpack.c.l.b16 %v59
  %v211 = vunpack.c.h.b16 %v59
  %v212 = vunpack.c.l.b16 %v60
  %v213 = vunpack.c.h.b16 %v60
  %v214 = vunpack.c.l.b16 %v61
  %v215 = vunpack.c.h.b16 %v61
  %v216 = vunpack.c.l.b16 %v62
  %v217 = vunpack.c.h.b16 %v62
  %v218 = vunpack.c.l.b16 %v63
  %v219 = vunpack.c.h.b16 %v63
  %v220 = vunpack.c.l.b16 %v64
  %v221 = vunpack.c.h.b16 %v64
  %v222 = vunpack.c.l.b16 %v65
  %v223 = vunpack.c.h.b16 %v65
  %v224 = vunpack.c.l.b16 %v66
  %v225 = vunpack.c.h.b16 %v66
  %v226 = vunpack.c.l.b16 %v67
  %v227 = vunpack.c.h.b16 %v67
  %v228 = vunpack.c.l.b16 %v68
  %v229 = vunpack.c.h.b16 %v68
  %v230 = vunpack.c.l.b16 %v69
  %v231 = vunpack.c.h.b16 %v69
  %v232 = vunpack.c.l.b16 %v70
  %v233 = vunpack.c.h.b16 %v70
  %v234 = vunpack.c.l.b16 %v71
  %v235 = vunpack.c.h.b16 %v71
  %v236 = vunpack.c.l.b16 %v72
  %v237 = vunpack.c.h.b16 %v72
  %v238 = vunpack.c.l.b16 %v73
  %v239 = vunpack.c.h.b16 %v73
  %v240 = vpack.c.b16 %v180, %v176
  %v241 = vpack.c.b16 %v181, %v177
  %v242 = vpack.c.b16 %v182, %v178
  %v243 = vpack.c.b16 %v183, %v179
  %v244 = vpack.c.b16 %v188, %v184
  %v245 = vpack.c.b16 %v189, %v185
  %v246 = vpack.c.b16 %v190, %v186
  %v247 = vpack.c.b16 %v191, %v187
  %v248 = vpack.c.b16 %v196, %v192
  %v249 = vpack.c.b16 %v197, %v193
  %v250 = vpack.c.b16 %v198, %v194
  %v251 = vpack.c.b16 %v199, %v195
  %v252 = vpack.c.b16 %v204, %v200
  %v253 = vpack.c.b16 %v205, %v201
  %v254 = vpack.c.b16 %v206, %v202
  %v255 = vpack.c.b16 %v207, %v203
  %v256 = vpack.c.b16 %v212, %v208
  %v257 = vpack.c.b16 %v213, %v209
  %v258 = vpack.c.b16 %v214, %v210
  %v259 = vpack.c.b16 %v215, %v211
  %v260 = vpack.c.b16 %v220, %v216
  %v261 = vpack.c.b16 %v221, %v217
  %v262 = vpack.c.b16 %v222, %v218
  %v263 = vpack.c.b16 %v223, %v219
  %v264 = vpack.c.b16 %v228, %v224
  %v265 = vpack.c.b16 %v229, %v225
  %v266 = vpack.c.b16 %v230, %v226
  %v267 = vpack.c.b16 %v231, %v227
  %v268 = vpack.c.b16 %v236, %v232
  %v269 = vpack.c.b16 %v237, %v233
  %v270 = vpack.c.b16 %v238, %v234
  %v271 = vpack.c.b16 %v239, %v235
  %304 = vmatprep.subr.bf16.mxu0 %v241
  %305 = vmatpush1.bf16.msra.mxu0 %v240
  %306 = vmatprep.subr.bf16.mxu0 %v245
  %307 = vmatpush1.bf16.msra.mxu0 %v244
  %308 = vmatprep.subr.bf16.mxu0 %v249
  %309 = vmatpush1.bf16.msra.mxu0 %v248
  %310 = vmatprep.subr.bf16.mxu0 %v253
  %311 = vmatpush1.bf16.msra.mxu0 %v252
  %312 = vmatprep.subr.bf16.mxu0 %v257
  %313 = vmatpush1.bf16.msra.mxu0 %v256
  %314 = vmatprep.subr.bf16.mxu0 %v261
  %315 = vmatpush1.bf16.msra.mxu0 %v260
  %316 = vmatprep.subr.bf16.mxu0 %v265
  %317 = vmatpush1.bf16.msra.mxu0 %v264
  %318 = vmatprep.subr.bf16.mxu0 %v269
  %319 = vmatpush1.bf16.msra.mxu0 %v268
  %320 = vmatprep.subr.bf16.mxu0 0
  %321 = vmatpush1.bf16.msra.mxu0 0
  %322 = vmatprep.subr.bf16.mxu0 0
  %323 = vmatpush1.bf16.msra.mxu0 0
  %324 = vmatprep.subr.bf16.mxu0 0
  %325 = vmatpush1.bf16.msra.mxu0 0
  %326 = vmatprep.subr.bf16.mxu0 0
  %327 = vmatpush1.bf16.msra.mxu0 0
  %328 = vmatprep.subr.bf16.mxu0 0
  %329 = vmatpush1.bf16.msra.mxu0 0
  %330 = vmatprep.subr.bf16.mxu0 0
  %331 = vmatpush1.bf16.msra.mxu0 0
  %332 = vmatprep.subr.bf16.mxu0 0
  %333 = vmatpush1.bf16.msra.mxu0 0
  %334 = vmatprep.subr.bf16.mxu0 0
  %335 = vmatpush1.bf16.msra.mxu0 0
  %336 = vmatprep.mubr.bf16.mxu0 0
  %337 = vmatmul.mubr.bf16.gmra.mrb[0].mxu0 %v128
  %v338 = vpop.f32.mrb[0].mxu0
  %v339 = vadd.f32 %v79, %v338
  %v340 = vpop.f32.mrb[0].mxu0
  %v341 = vadd.f32 %v83, %v340
  %v342 = vpop.f32.mrb[0].mxu0
  %v343 = vadd.f32 %v79, %v342
  %v344 = vpop.f32.mrb[0].mxu0
  %v345 = vadd.f32 %v83, %v344
  %346 = vmatprep.mubr.bf16.mxu0 0
  %347 = vmatmul.mubr.bf16.gmra.mrb[0].mxu0 %v129
  %v348 = vpop.f32.mrb[0].mxu0
  %v349 = vadd.f32 %v79, %v348
  %v350 = vpop.f32.mrb[0].mxu0
  %v351 = vadd.f32 %v83, %v350
  %v352 = vpop.f32.mrb[0].mxu0
  %v353 = vadd.f32 %v79, %v352
  %v354 = vpop.f32.mrb[0].mxu0
  %v355 = vadd.f32 %v83, %v354
  %356 = vmatprep.mubr.bf16.mxu0 0
  %357 = vmatmul.mubr.bf16.gmra.mrb[0].mxu0 %v130
  %v358 = vpop.f32.mrb[0].mxu0
  %v359 = vadd.f32 %v79, %v358
  %v360 = vpop.f32.mrb[0].mxu0
  %v361 = vadd.f32 %v83, %v360
  %v362 = vpop.f32.mrb[0].mxu0
  %v363 = vadd.f32 %v79, %v362
  %v364 = vpop.f32.mrb[0].mxu0
  %v365 = vadd.f32 %v83, %v364
  %366 = vmatprep.mubr.bf16.mxu0 0
  %367 = vmatmul.mubr.bf16.gmra.mrb[0].mxu0 %v131
  %v368 = vpop.f32.mrb[0].mxu0
  %v369 = vadd.f32 %v79, %v368
  %v370 = vpop.f32.mrb[0].mxu0
  %v371 = vadd.f32 %v83, %v370
  %v372 = vpop.f32.mrb[0].mxu0
  %v373 = vadd.f32 %v79, %v372
  %v374 = vpop.f32.mrb[0].mxu0
  %v375 = vadd.f32 %v83, %v374
  %376 = vmatprep.mubr.bf16.mxu0 0
  %377 = vmatmul.mubr.bf16.gmra.mrb[0].mxu0 %v132
  %v378 = vpop.f32.mrb[0].mxu0
  %v379 = vadd.f32 %v79, %v378
  %v380 = vpop.f32.mrb[0].mxu0
  %v381 = vadd.f32 %v83, %v380
  %v382 = vpop.f32.mrb[0].mxu0
  %v383 = vadd.f32 %v79, %v382
  %v384 = vpop.f32.mrb[0].mxu0
  %v385 = vadd.f32 %v83, %v384
  %386 = vmatprep.mubr.bf16.mxu0 0
  %387 = vmatmul.mubr.bf16.gmra.mrb[0].mxu0 %v133
  %v388 = vpop.f32.mrb[0].mxu0
  %v389 = vadd.f32 %v79, %v388
  %v390 = vpop.f32.mrb[0].mxu0
  %v391 = vadd.f32 %v83, %v390
  %v392 = vpop.f32.mrb[0].mxu0
  %v393 = vadd.f32 %v79, %v392
  %v394 = vpop.f32.mrb[0].mxu0
  %v395 = vadd.f32 %v83, %v394
  %396 = vmatprep.mubr.bf16.mxu0 0
  %397 = vmatmul.mubr.bf16.gmra.mrb[0].mxu0 %v134
  %v398 = vpop.f32.mrb[0].mxu0
  %v399 = vadd.f32 %v79, %v398
  %v400 = vpop.f32.mrb[0].mxu0
  %v401 = vadd.f32 %v83, %v400
  %v402 = vpop.f32.mrb[0].mxu0
  %v403 = vadd.f32 %v79, %v402
  %v404 = vpop.f32.mrb[0].mxu0
  %v405 = vadd.f32 %v83, %v404
  %406 = vmatprep.mubr.bf16.mxu0 0
  %407 = vmatmul.mubr.bf16.gmra.mrb[0].mxu0 %v135
  %v408 = vpop.f32.mrb[0].mxu0
  %v409 = vadd.f32 %v79, %v408
  %v410 = vpop.f32.mrb[0].mxu0
  %v411 = vadd.f32 %v83, %v410
  %v412 = vpop.f32.mrb[0].mxu0
  %v413 = vadd.f32 %v79, %v412
  %v414 = vpop.f32.mrb[0].mxu0
  %v415 = vadd.f32 %v83, %v414
  %416 = vdwg.mxu0
  %417 = vmatprep.subr.bf16.mxu0 %v243
  %418 = vmatpush1.bf16.msra.mxu0 %v242
  %419 = vmatprep.subr.bf16.mxu0 %v247
  %420 = vmatpush1.bf16.msra.mxu0 %v246
  %421 = vmatprep.subr.bf16.mxu0 %v251
  %422 = vmatpush1.bf16.msra.mxu0 %v250
  %423 = vmatprep.subr.bf16.mxu0 %v255
  %424 = vmatpush1.bf16.msra.mxu0 %v254
  %425 = vmatprep.subr.bf16.mxu0 %v259
  %426 = vmatpush1.bf16.msra.mxu0 %v258
  %427 = vmatprep.subr.bf16.mxu0 %v263
  %428 = vmatpush1.bf16.msra.mxu0 %v262
  %429 = vmatprep.subr.bf16.mxu0 %v267
  %430 = vmatpush1.bf16.msra.mxu0 %v266
  %431 = vmatprep.subr.bf16.mxu0 %v271
  %432 = vmatpush1.bf16.msra.mxu0 %v270
  %433 = vmatprep.subr.bf16.mxu0 0
  %434 = vmatpush1.bf16.msra.mxu0 0
  %435 = vmatprep.subr.bf16.mxu0 0
  %436 = vmatpush1.bf16.msra.mxu0 0
  %437 = vmatprep.subr.bf16.mxu0 0
  %438 = vmatpush1.bf16.msra.mxu0 0
  %439 = vmatprep.subr.bf16.mxu0 0
  %440 = vmatpush1.bf16.msra.mxu0 0
  %441 = vmatprep.subr.bf16.mxu0 0
  %442 = vmatpush1.bf16.msra.mxu0 0
  %443 = vmatprep.subr.bf16.mxu0 0
  %444 = vmatpush1.bf16.msra.mxu0 0
  %445 = vmatprep.subr.bf16.mxu0 0
  %446 = vmatpush1.bf16.msra.mxu0 0
  %447 = vmatprep.subr.bf16.mxu0 0
  %448 = vmatpush1.bf16.msra.mxu0 0
  %449 = vmatprep.mubr.bf16.mxu0 0
  %450 = vmatmul.mubr.bf16.gmra.mrb[0].mxu0 %v128
  %v451 = vpop.f32.mrb[0].mxu0
  %v452 = vadd.f32 %v87, %v451
  %v453 = vpop.f32.mrb[0].mxu0
  %v454 = vadd.f32 %v91, %v453
  %v455 = vpop.f32.mrb[0].mxu0
  %v456 = vadd.f32 %v87, %v455
  %v457 = vpop.f32.mrb[0].mxu0
  %v458 = vadd.f32 %v91, %v457
  %459 = vmatprep.mubr.bf16.mxu0 0
  %460 = vmatmul.mubr.bf16.gmra.mrb[0].mxu0 %v129
  %v461 = vpop.f32.mrb[0].mxu0
  %v462 = vadd.f32 %v87, %v461
  %v463 = vpop.f32.mrb[0].mxu0
  %v464 = vadd.f32 %v91, %v463
  %v465 = vpop.f32.mrb[0].mxu0
  %v466 = vadd.f32 %v87, %v465
  %v467 = vpop.f32.mrb[0].mxu0
  %v468 = vadd.f32 %v91, %v467
  %469 = vmatprep.mubr.bf16.mxu0 0
  %470 = vmatmul.mubr.bf16.gmra.mrb[0].mxu0 %v130
  %v471 = vpop.f32.mrb[0].mxu0
  %v472 = vadd.f32 %v87, %v471
  %v473 = vpop.f32.mrb[0].mxu0
  %v474 = vadd.f32 %v91, %v473
  %v475 = vpop.f32.mrb[0].mxu0
  %v476 = vadd.f32 %v87, %v475
  %v477 = vpop.f32.mrb[0].mxu0
  %v478 = vadd.f32 %v91, %v477
  %479 = vmatprep.mubr.bf16.mxu0 0
  %480 = vmatmul.mubr.bf16.gmra.mrb[0].mxu0 %v131
  %v481 = vpop.f32.mrb[0].mxu0
  %v482 = vadd.f32 %v87, %v481
  %v483 = vpop.f32.mrb[0].mxu0
  %v484 = vadd.f32 %v91, %v483
  %v485 = vpop.f32.mrb[0].mxu0
  %v486 = vadd.f32 %v87, %v485
  %v487 = vpop.f32.mrb[0].mxu0
  %v488 = vadd.f32 %v91, %v487
  %489 = vmatprep.mubr.bf16.mxu0 0
  %490 = vmatmul.mubr.bf16.gmra.mrb[0].mxu0 %v132
  %v491 = vpop.f32.mrb[0].mxu0
  %v492 = vadd.f32 %v87, %v491
  %v493 = vpop.f32.mrb[0].mxu0
  %v494 = vadd.f32 %v91, %v493
  %v495 = vpop.f32.mrb[0].mxu0
  %v496 = vadd.f32 %v87, %v495
  %v497 = vpop.f32.mrb[0].mxu0
  %v498 = vadd.f32 %v91, %v497
  %499 = vmatprep.mubr.bf16.mxu0 0
  %500 = vmatmul.mubr.bf16.gmra.mrb[0].mxu0 %v133
  %v501 = vpop.f32.mrb[0].mxu0
  %v502 = vadd.f32 %v87, %v501
  %v503 = vpop.f32.mrb[0].mxu0
  %v504 = vadd.f32 %v91, %v503
  %v505 = vpop.f32.mrb[0].mxu0
  %v506 = vadd.f32 %v87, %v505
  %v507 = vpop.f32.mrb[0].mxu0
  %v508 = vadd.f32 %v91, %v507
  %509 = vmatprep.mubr.bf16.mxu0 0
  %510 = vmatmul.mubr.bf16.gmra.mrb[0].mxu0 %v134
  %v511 = vpop.f32.mrb[0].mxu0
  %v512 = vadd.f32 %v87, %v511
  %v513 = vpop.f32.mrb[0].mxu0
  %v514 = vadd.f32 %v91, %v513
  %v515 = vpop.f32.mrb[0].mxu0
  %v516 = vadd.f32 %v87, %v515
  %v517 = vpop.f32.mrb[0].mxu0
  %v518 = vadd.f32 %v91, %v517
  %519 = vmatprep.mubr.bf16.mxu0 0
  %520 = vmatmul.mubr.bf16.gmra.mrb[0].mxu0 %v135
  %v521 = vpop.f32.mrb[0].mxu0
  %v522 = vadd.f32 %v87, %v521
  %v523 = vpop.f32.mrb[0].mxu0
  %v524 = vadd.f32 %v91, %v523
  %v525 = vpop.f32.mrb[0].mxu0
  %v526 = vadd.f32 %v87, %v525
  %v527 = vpop.f32.mrb[0].mxu0
  %v528 = vadd.f32 %v91, %v527
  %529 = vdwg.mxu0
  %530 = vst [vmem:[#allocation4] sm:$0xff] %v339
  %531 = vst [vmem:[#allocation4 + $0x8] sm:$0xff] %v341
  %532 = vst [vmem:[#allocation4 + $0x10] sm:$0xff] %v452
  %533 = vst [vmem:[#allocation4 + $0x18] sm:$0xff] %v454
  %534 = vst [vmem:[#allocation4 + $0x20] sm:$0xff] %v343
  %535 = vst [vmem:[#allocation4 + $0x28] sm:$0xff] %v345
  %536 = vst [vmem:[#allocation4 + $0x30] sm:$0xff] %v456
  %537 = vst [vmem:[#allocation4 + $0x38] sm:$0xff] %v458
  %538 = vst [vmem:[#allocation4 + $0x40] sm:$0xff] %v349
  %539 = vst [vmem:[#allocation4 + $0x48] sm:$0xff] %v351
  %540 = vst [vmem:[#allocation4 + $0x50] sm:$0xff] %v462
  %541 = vst [vmem:[#allocation4 + $0x58] sm:$0xff] %v464
  %542 = vst [vmem:[#allocation4 + $0x60] sm:$0xff] %v353
  %543 = vst [vmem:[#allocation4 + $0x68] sm:$0xff] %v355
  %544 = vst [vmem:[#allocation4 + $0x70] sm:$0xff] %v466
  %545 = vst [vmem:[#allocation4 + $0x78] sm:$0xff] %v468
  %546 = vst [vmem:[#allocation4 + $0x80] sm:$0xff] %v359
  %547 = vst [vmem:[#allocation4 + $0x88] sm:$0xff] %v361
  %548 = vst [vmem:[#allocation4 + $0x90] sm:$0xff] %v472
  %549 = vst [vmem:[#allocation4 + $0x98] sm:$0xff] %v474
  %550 = vst [vmem:[#allocation4 + $0xa0] sm:$0xff] %v363
  %551 = vst [vmem:[#allocation4 + $0xa8] sm:$0xff] %v365
  %552 = vst [vmem:[#allocation4 + $0xb0] sm:$0xff] %v476
  %553 = vst [vmem:[#allocation4 + $0xb8] sm:$0xff] %v478
  %554 = vst [vmem:[#allocation4 + $0xc0] sm:$0xff] %v369
  %555 = vst [vmem:[#allocation4 + $0xc8] sm:$0xff] %v371
  %556 = vst [vmem:[#allocation4 + $0xd0] sm:$0xff] %v482
  %557 = vst [vmem:[#allocation4 + $0xd8] sm:$0xff] %v484
  %558 = vst [vmem:[#allocation4 + $0xe0] sm:$0xff] %v373
  %559 = vst [vmem:[#allocation4 + $0xe8] sm:$0xff] %v375
  %560 = vst [vmem:[#allocation4 + $0xf0] sm:$0xff] %v486
  %561 = vst [vmem:[#allocation4 + $0xf8] sm:$0xff] %v488
  %562 = vst [vmem:[#allocation4 + $0x100] sm:$0xff] %v379
  %563 = vst [vmem:[#allocation4 + $0x108] sm:$0xff] %v381
  %564 = vst [vmem:[#allocation4 + $0x110] sm:$0xff] %v492
  %565 = vst [vmem:[#allocation4 + $0x118] sm:$0xff] %v494
  %566 = vst [vmem:[#allocation4 + $0x120] sm:$0xff] %v383
  %567 = vst [vmem:[#allocation4 + $0x128] sm:$0xff] %v385
  %568 = vst [vmem:[#allocation4 + $0x130] sm:$0xff] %v496
  %569 = vst [vmem:[#allocation4 + $0x138] sm:$0xff] %v498
  %570 = vst [vmem:[#allocation4 + $0x140] sm:$0xff] %v389
  %571 = vst [vmem:[#allocation4 + $0x148] sm:$0xff] %v391
  %572 = vst [vmem:[#allocation4 + $0x150] sm:$0xff] %v502
  %573 = vst [vmem:[#allocation4 + $0x158] sm:$0xff] %v504
  %574 = vst [vmem:[#allocation4 + $0x160] sm:$0xff] %v393
  %575 = vst [vmem:[#allocation4 + $0x168] sm:$0xff] %v395
  %576 = vst [vmem:[#allocation4 + $0x170] sm:$0xff] %v506
  %577 = vst [vmem:[#allocation4 + $0x178] sm:$0xff] %v508
  %578 = vst [vmem:[#allocation4 + $0x180] sm:$0xff] %v399
  %579 = vst [vmem:[#allocation4 + $0x188] sm:$0xff] %v401
  %580 = vst [vmem:[#allocation4 + $0x190] sm:$0xff] %v512
  %581 = vst [vmem:[#allocation4 + $0x198] sm:$0xff] %v514
  %582 = vst [vmem:[#allocation4 + $0x1a0] sm:$0xff] %v403
  %583 = vst [vmem:[#allocation4 + $0x1a8] sm:$0xff] %v405
  %584 = vst [vmem:[#allocation4 + $0x1b0] sm:$0xff] %v516
  %585 = vst [vmem:[#allocation4 + $0x1b8] sm:$0xff] %v518
  %586 = vst [vmem:[#allocation4 + $0x1c0] sm:$0xff] %v409
  %587 = vst [vmem:[#allocation4 + $0x1c8] sm:$0xff] %v411
  %588 = vst [vmem:[#allocation4 + $0x1d0] sm:$0xff] %v522
  %589 = vst [vmem:[#allocation4 + $0x1d8] sm:$0xff] %v524
  %590 = vst [vmem:[#allocation4 + $0x1e0] sm:$0xff] %v413
  %591 = vst [vmem:[#allocation4 + $0x1e8] sm:$0xff] %v415
  %592 = vst [vmem:[#allocation4 + $0x1f0] sm:$0xff] %v526
  %593 = vst [vmem:[#allocation4 + $0x1f8] sm:$0xff] %v528
  %v594 = vld [vmem:[%s2] sm:$0xff]
  %v595 = vld [vmem:[%s2 + $0x8] sm:$0xff]
  %v596 = vld [vmem:[%s2 + $0x10] sm:$0xff]
  %v597 = vld [vmem:[%s2 + $0x18] sm:$0xff]
  %v598 = vld [vmem:[%s2 + $0x20] sm:$0xff]
  %v599 = vld [vmem:[%s2 + $0x28] sm:$0xff]
  %v600 = vld [vmem:[%s2 + $0x30] sm:$0xff]
  %v601 = vld [vmem:[%s2 + $0x38] sm:$0xff]
  %v602 = vld [vmem:[%s2 + $0x40] sm:$0xff]
  %v603 = vld [vmem:[%s2 + $0x48] sm:$0xff]
  %v604 = vld [vmem:[%s2 + $0x50] sm:$0xff]
  %v605 = vld [vmem:[%s2 + $0x58] sm:$0xff]
  %v606 = vld [vmem:[%s2 + $0x60] sm:$0xff]
  %v607 = vld [vmem:[%s2 + $0x68] sm:$0xff]
  %v608 = vld [vmem:[%s2 + $0x70] sm:$0xff]
  %v609 = vld [vmem:[%s2 + $0x78] sm:$0xff]
  %v610 = vld [vmem:[%s2 + $0x80] sm:$0xff]
  %v611 = vld [vmem:[%s2 + $0x88] sm:$0xff]
  %v612 = vld [vmem:[%s2 + $0x90] sm:$0xff]
  %v613 = vld [vmem:[%s2 + $0x98] sm:$0xff]
  %v614 = vld [vmem:[%s2 + $0xa0] sm:$0xff]
  %v615 = vld [vmem:[%s2 + $0xa8] sm:$0xff]
  %v616 = vld [vmem:[%s2 + $0xb0] sm:$0xff]
  %v617 = vld [vmem:[%s2 + $0xb8] sm:$0xff]
  %v618 = vld [vmem:[%s2 + $0xc0] sm:$0xff]
  %v619 = vld [vmem:[%s2 + $0xc8] sm:$0xff]
  %v620 = vld [vmem:[%s2 + $0xd0] sm:$0xff]
  %v621 = vld [vmem:[%s2 + $0xd8] sm:$0xff]
  %v622 = vld [vmem:[%s2 + $0xe0] sm:$0xff]
  %v623 = vld [vmem:[%s2 + $0xe8] sm:$0xff]
  %v624 = vld [vmem:[%s2 + $0xf0] sm:$0xff]
  %v625 = vld [vmem:[%s2 + $0xf8] sm:$0xff]
  %v626 = vld [vmem:[#allocation2] sm:$0xff]
  %v627 = vld [vmem:[#allocation2 + $0x8] sm:$0xff]
  %v628 = vld [vmem:[#allocation3] sm:$0xff]
  %v629 = vld [vmem:[#allocation3 + $0x8] sm:$0xff]
  %v630 = vld [vmem:[#allocation4] sm:$0xff]
  %v631 = vld [vmem:[#allocation4 + $0x8] sm:$0xff]
  %v632 = vld [vmem:[#allocation4 + $0x10] sm:$0xff]
  %v633 = vld [vmem:[#allocation4 + $0x18] sm:$0xff]
  %v634 = vld [vmem:[#allocation4 + $0x20] sm:$0xff]
  %v635 = vld [vmem:[#allocation4 + $0x28] sm:$0xff]
  %v636 = vld [vmem:[#allocation4 + $0x30] sm:$0xff]
  %v637 = vld [vmem:[#allocation4 + $0x38] sm:$0xff]
  %v638 = vpack.c.bf16 %v627, %v626
  %v671 = vunpack.c.l.b16 %v594
  %v672 = vunpack.c.h.b16 %v594
  %v673 = vunpack.c.l.b16 %v595
  %v674 = vunpack.c.h.b16 %v595
  %v675 = vunpack.c.l.b16 %v596
  %v676 = vunpack.c.h.b16 %v596
  %v677 = vunpack.c.l.b16 %v597
  %v678 = vunpack.c.h.b16 %v597
  %v679 = vunpack.c.l.b16 %v598
  %v680 = vunpack.c.h.b16 %v598
  %v681 = vunpack.c.l.b16 %v599
  %v682 = vunpack.c.h.b16 %v599
  %v683 = vunpack.c.l.b16 %v600
  %v684 = vunpack.c.h.b16 %v600
  %v685 = vunpack.c.l.b16 %v601
  %v686 = vunpack.c.h.b16 %v601
  %v687 = vunpack.c.l.b16 %v602
  %v688 = vunpack.c.h.b16 %v602
  %v689 = vunpack.c.l.b16 %v603
  %v690 = vunpack.c.h.b16 %v603
  %v691 = vunpack.c.l.b16 %v604
  %v692 = vunpack.c.h.b16 %v604
  %v693 = vunpack.c.l.b16 %v605
  %v694 = vunpack.c.h.b16 %v605
  %v695 = vunpack.c.l.b16 %v606
  %v696 = vunpack.c.h.b16 %v606
  %v697 = vunpack.c.l.b16 %v607
  %v698 = vunpack.c.h.b16 %v607
  %v699 = vunpack.c.l.b16 %v608
  %v700 = vunpack.c.h.b16 %v608
  %v701 = vunpack.c.l.b16 %v609
  %v702 = vunpack.c.h.b16 %v609
  %v703 = vunpack.c.l.b16 %v610
  %v704 = vunpack.c.h.b16 %v610
  %v705 = vunpack.c.l.b16 %v611
  %v706 = vunpack.c.h.b16 %v611
  %v707 = vunpack.c.l.b16 %v612
  %v708 = vunpack.c.h.b16 %v612
  %v709 = vunpack.c.l.b16 %v613
  %v710 = vunpack.c.h.b16 %v613
  %v711 = vunpack.c.l.b16 %v614
  %v712 = vunpack.c.h.b16 %v614
  %v713 = vunpack.c.l.b16 %v615
  %v714 = vunpack.c.h.b16 %v615
  %v715 = vunpack.c.l.b16 %v616
  %v716 = vunpack.c.h.b16 %v616
  %v717 = vunpack.c.l.b16 %v617
  %v718 = vunpack.c.h.b16 %v617
  %v719 = vunpack.c.l.b16 %v618
  %v720 = vunpack.c.h.b16 %v618
  %v721 = vunpack.c.l.b16 %v619
  %v722 = vunpack.c.h.b16 %v619
  %v723 = vunpack.c.l.b16 %v620
  %v724 = vunpack.c.h.b16 %v620
  %v725 = vunpack.c.l.b16 %v621
  %v726 = vunpack.c.h.b16 %v621
  %v727 = vunpack.c.l.b16 %v622
  %v728 = vunpack.c.h.b16 %v622
  %v729 = vunpack.c.l.b16 %v623
  %v730 = vunpack.c.h.b16 %v623
  %v731 = vunpack.c.l.b16 %v624
  %v732 = vunpack.c.h.b16 %v624
  %v733 = vunpack.c.l.b16 %v625
  %v734 = vunpack.c.h.b16 %v625
  %v735 = vpack.c.b16 %v675, %v671
  %v736 = vpack.c.b16 %v676, %v672
  %v737 = vpack.c.b16 %v677, %v673
  %v738 = vpack.c.b16 %v678, %v674
  %v739 = vpack.c.b16 %v683, %v679
  %v740 = vpack.c.b16 %v684, %v680
  %v741 = vpack.c.b16 %v685, %v681
  %v742 = vpack.c.b16 %v686, %v682
  %v743 = vpack.c.b16 %v691, %v687
  %v744 = vpack.c.b16 %v692, %v688
  %v745 = vpack.c.b16 %v693, %v689
  %v746 = vpack.c.b16 %v694, %v690
  %v747 = vpack.c.b16 %v699, %v695
  %v748 = vpack.c.b16 %v700, %v696
  %v749 = vpack.c.b16 %v701, %v697
  %v750 = vpack.c.b16 %v702, %v698
  %v751 = vpack.c.b16 %v707, %v703
  %v752 = vpack.c.b16 %v708, %v704
  %v753 = vpack.c.b16 %v709, %v705
  %v754 = vpack.c.b16 %v710, %v706
  %v755 = vpack.c.b16 %v715, %v711
  %v756 = vpack.c.b16 %v716, %v712
  %v757 = vpack.c.b16 %v717, %v713
  %v758 = vpack.c.b16 %v718, %v714
  %v759 = vpack.c.b16 %v723, %v719
  %v760 = vpack.c.b16 %v724, %v720
  %v761 = vpack.c.b16 %v725, %v721
  %v762 = vpack.c.b16 %v726, %v722
  %v763 = vpack.c.b16 %v731, %v727
  %v764 = vpack.c.b16 %v732, %v728
  %v765 = vpack.c.b16 %v733, %v729
  %v766 = vpack.c.b16 %v734, %v730
  %799 = vmatprep.subr.bf16.mxu0 %v736
  %800 = vmatpush1.bf16.msra.mxu0 %v735
  %801 = vmatprep.subr.bf16.mxu0 %v740
  %802 = vmatpush1.bf16.msra.mxu0 %v739
  %803 = vmatprep.subr.bf16.mxu0 %v744
  %804 = vmatpush1.bf16.msra.mxu0 %v743
  %805 = vmatprep.subr.bf16.mxu0 %v748
  %806 = vmatpush1.bf16.msra.mxu0 %v747
  %807 = vmatprep.subr.bf16.mxu0 %v752
  %808 = vmatpush1.bf16.msra.mxu0 %v751
  %809 = vmatprep.subr.bf16.mxu0 %v756
  %810 = vmatpush1.bf16.msra.mxu0 %v755
  %811 = vmatprep.subr.bf16.mxu0 %v760
  %812 = vmatpush1.bf16.msra.mxu0 %v759
  %813 = vmatprep.subr.bf16.mxu0 %v764
  %814 = vmatpush1.bf16.msra.mxu0 %v763
  %815 = vmatprep.subr.bf16.mxu0 0
  %816 = vmatpush1.bf16.msra.mxu0 0
  %817 = vmatprep.subr.bf16.mxu0 0
  %818 = vmatpush1.bf16.msra.mxu0 0
  %819 = vmatprep.subr.bf16.mxu0 0
  %820 = vmatpush1.bf16.msra.mxu0 0
  %821 = vmatprep.subr.bf16.mxu0 0
  %822 = vmatpush1.bf16.msra.mxu0 0
  %823 = vmatprep.subr.bf16.mxu0 0
  %824 = vmatpush1.bf16.msra.mxu0 0
  %825 = vmatprep.subr.bf16.mxu0 0
  %826 = vmatpush1.bf16.msra.mxu0 0
  %827 = vmatprep.subr.bf16.mxu0 0
  %828 = vmatpush1.bf16.msra.mxu0 0
  %829 = vmatprep.subr.bf16.mxu0 0
  %830 = vmatpush1.bf16.msra.mxu0 0
  %831 = vmatprep.mubr.bf16.mxu0 0
  %832 = vmatmul.mubr.bf16.gmra.mrb[0].mxu0 %v638
  %v833 = vpop.f32.mrb[0].mxu0
  %v834 = vadd.f32 0.0, %v833
  %v835 = vpop.f32.mrb[0].mxu0
  %v836 = vadd.f32 0.0, %v835
  %v837 = vpop.f32.mrb[0].mxu0
  %v838 = vadd.f32 0.0, %v837
  %v839 = vpop.f32.mrb[0].mxu0
  %v840 = vadd.f32 0.0, %v839
  %841 = vdwg.mxu0
  %842 = vmatprep.subr.bf16.mxu0 %v738
  %843 = vmatpush1.bf16.msra.mxu0 %v737
  %844 = vmatprep.subr.bf16.mxu0 %v742
  %845 = vmatpush1.bf16.msra.mxu0 %v741
  %846 = vmatprep.subr.bf16.mxu0 %v746
  %847 = vmatpush1.bf16.msra.mxu0 %v745
  %848 = vmatprep.subr.bf16.mxu0 %v750
  %849 = vmatpush1.bf16.msra.mxu0 %v749
  %850 = vmatprep.subr.bf16.mxu0 %v754
  %851 = vmatpush1.bf16.msra.mxu0 %v753
  %852 = vmatprep.subr.bf16.mxu0 %v758
  %853 = vmatpush1.bf16.msra.mxu0 %v757
  %854 = vmatprep.subr.bf16.mxu0 %v762
  %855 = vmatpush1.bf16.msra.mxu0 %v761
  %856 = vmatprep.subr.bf16.mxu0 %v766
  %857 = vmatpush1.bf16.msra.mxu0 %v765
  %858 = vmatprep.subr.bf16.mxu0 0
  %859 = vmatpush1.bf16.msra.mxu0 0
  %860 = vmatprep.subr.bf16.mxu0 0
  %861 = vmatpush1.bf16.msra.mxu0 0
  %862 = vmatprep.subr.bf16.mxu0 0
  %863 = vmatpush1.bf16.msra.mxu0 0
  %864 = vmatprep.subr.bf16.mxu0 0
  %865 = vmatpush1.bf16.msra.mxu0 0
  %866 = vmatprep.subr.bf16.mxu0 0
  %867 = vmatpush1.bf16.msra.mxu0 0
  %868 = vmatprep.subr.bf16.mxu0 0
  %869 = vmatpush1.bf16.msra.mxu0 0
  %870 = vmatprep.subr.bf16.mxu0 0
  %871 = vmatpush1.bf16.msra.mxu0 0
  %872 = vmatprep.subr.bf16.mxu0 0
  %873 = vmatpush1.bf16.msra.mxu0 0
  %874 = vmatprep.mubr.bf16.mxu0 0
  %875 = vmatmul.mubr.bf16.gmra.mrb[0].mxu0 %v638
  %v876 = vpop.f32.mrb[0].mxu0
  %v877 = vadd.f32 0.0, %v876
  %v878 = vpop.f32.mrb[0].mxu0
  %v879 = vadd.f32 0.0, %v878
  %v880 = vpop.f32.mrb[0].mxu0
  %v881 = vadd.f32 0.0, %v880
  %v882 = vpop.f32.mrb[0].mxu0
  %v883 = vadd.f32 0.0, %v882
  %884 = vdwg.mxu0
  %v885 = vadd.f32 %v630, %v834
  %v886 = vadd.f32 %v631, %v836
  %v887 = vadd.f32 %v632, %v877
  %v888 = vadd.f32 %v633, %v879
  %v889 = vadd.f32 %v634, %v838
  %v890 = vadd.f32 %v635, %v840
  %v891 = vadd.f32 %v636, %v881
  %v892 = vadd.f32 %v637, %v883
  %v893 = vxor.u32 %v885, 2147483648
  %v894 = vxor.u32 %v889, 2147483648
  %v895 = vmul.f32 %v893, 1.442695
  %v896 = vpow.pop %v895
  %v897 = vmul.f32 %v894, 1.442695
  %v898 = vpow.pop %v897
  %v899 = vadd.f32 %v896, 1.0
  %v900 = vadd.f32 %v898, 1.0
  %v901 = vrcp.pop %v899
  %v902 = vmul.f32 1.0, %v901
  %v903 = vrcp.pop %v900
  %v904 = vmul.f32 1.0, %v903
  %v905 = vxor.u32 %v886, 2147483648
  %v906 = vxor.u32 %v890, 2147483648
  %v907 = vmul.f32 %v905, 1.442695
  %v908 = vpow.pop %v907
  %v909 = vmul.f32 %v906, 1.442695
  %v910 = vpow.pop %v909
  %v911 = vadd.f32 %v908, 1.0
  %v912 = vadd.f32 %v910, 1.0
  %v913 = vrcp.pop %v911
  %v914 = vmul.f32 1.0, %v913
  %v915 = vrcp.pop %v912
  %v916 = vmul.f32 1.0, %v915
  %v917 = vtanh.pop %v887
  %v918 = vtanh.pop %v891
  %v919 = vxor.u32 %v888, 2147483648
  %v920 = vxor.u32 %v892, 2147483648
  %v921 = vmul.f32 %v919, 1.442695
  %v922 = vpow.pop %v921
  %v923 = vmul.f32 %v920, 1.442695
  %v924 = vpow.pop %v923
  %v925 = vadd.f32 %v922, 1.0
  %v926 = vadd.f32 %v924, 1.0
  %v927 = vrcp.pop %v925
  %v928 = vmul.f32 1.0, %v927
  %v929 = vrcp.pop %v926
  %v930 = vmul.f32 1.0, %v929
  %v931 = vmul.f32 %v914, %v628
  %v932 = vmul.f32 %v916, %v629
  %v933 = vmul.f32 %v902, %v917
  %v934 = vmul.f32 %v904, %v918
  %v935 = vadd.f32 %v931, %v933
  %v936 = vadd.f32 %v932, %v934
  %v937 = vtanh.pop %v935
  %v938 = vtanh.pop %v936
  %v939 = vmul.f32 %v928, %v937
  %v940 = vmul.f32 %v930, %v938
  %v941 = vpack.c.bf16 %v940, %v939
  %v943 = vunpack.c.l.b16 %v941
  %v944 = vunpack.c.h.b16 %v941
  %v945 = vpack.c.b16 %v943, %v943
  %v946 = vpack.c.b16 %v944, %v944
  %949 = vst [vmem:[%s4] sm:$0xf] %v945
  %950 = vst [vmem:[%s4 + $0x4] sm:$0xf] %v946
  %s951 = scalar_lea.vmem [#allocation4], 64
  %v952 = vld [vmem:[%s951] sm:$0xff]
  %v953 = vld [vmem:[%s951 + $0x8] sm:$0xff]
  %v954 = vld [vmem:[%s951 + $0x10] sm:$0xff]
  %v955 = vld [vmem:[%s951 + $0x18] sm:$0xff]
  %v956 = vld [vmem:[%s951 + $0x20] sm:$0xff]
  %v957 = vld [vmem:[%s951 + $0x28] sm:$0xff]
  %v958 = vld [vmem:[%s951 + $0x30] sm:$0xff]
  %v959 = vld [vmem:[%s951 + $0x38] sm:$0xff]
  %960 = vmatprep.subr.bf16.mxu0 %v736
  %961 = vmatpush1.bf16.msra.mxu0 %v735
  %962 = vmatprep.subr.bf16.mxu0 %v740
  %963 = vmatpush1.bf16.msra.mxu0 %v739
  %964 = vmatprep.subr.bf16.mxu0 %v744
  %965 = vmatpush1.bf16.msra.mxu0 %v743
  %966 = vmatprep.subr.bf16.mxu0 %v748
  %967 = vmatpush1.bf16.msra.mxu0 %v747
  %968 = vmatprep.subr.bf16.mxu0 %v752
  %969 = vmatpush1.bf16.msra.mxu0 %v751
  %970 = vmatprep.subr.bf16.mxu0 %v756
  %971 = vmatpush1.bf16.msra.mxu0 %v755
  %972 = vmatprep.subr.bf16.mxu0 %v760
  %973 = vmatpush1.bf16.msra.mxu0 %v759
  %974 = vmatprep.subr.bf16.mxu0 %v764
  %975 = vmatpush1.bf16.msra.mxu0 %v763
  %976 = vmatprep.subr.bf16.mxu0 0
  %977 = vmatpush1.bf16.msra.mxu0 0
  %978 = vmatprep.subr.bf16.mxu0 0
  %979 = vmatpush1.bf16.msra.mxu0 0
  %980 = vmatprep.subr.bf16.mxu0 0
  %981 = vmatpush1.bf16.msra.mxu0 0
  %982 = vmatprep.subr.bf16.mxu0 0
  %983 = vmatpush1.bf16.msra.mxu0 0
  %984 = vmatprep.subr.bf16.mxu0 0
  %985 = vmatpush1.bf16.msra.mxu0 0
  %986 = vmatprep.subr.bf16.mxu0 0
  %987 = vmatpush1.bf16.msra.mxu0 0
  %988 = vmatprep.subr.bf16.mxu0 0
  %989 = vmatpush1.bf16.msra.mxu0 0
  %990 = vmatprep.subr.bf16.mxu0 0
  %991 = vmatpush1.bf16.msra.mxu0 0
  %992 = vmatprep.mubr.bf16.mxu0 0
  %993 = vmatmul.mubr.bf16.gmra.mrb[0].mxu0 %v941
  %v994 = vpop.f32.mrb[0].mxu0
  %v995 = vadd.f32 0.0, %v994
  %v996 = vpop.f32.mrb[0].mxu0
  %v997 = vadd.f32 0.0, %v996
  %v998 = vpop.f32.mrb[0].mxu0
  %v999 = vadd.f32 0.0, %v998
  %v1000 = vpop.f32.mrb[0].mxu0
  %v1001 = vadd.f32 0.0, %v1000
  %1002 = vdwg.mxu0
  %1003 = vmatprep.subr.bf16.mxu0 %v738
  %1004 = vmatpush1.bf16.msra.mxu0 %v737
  %1005 = vmatprep.subr.bf16.mxu0 %v742
  %1006 = vmatpush1.bf16.msra.mxu0 %v741
  %1007 = vmatprep.subr.bf16.mxu0 %v746
  %1008 = vmatpush1.bf16.msra.mxu0 %v745
  %1009 = vmatprep.subr.bf16.mxu0 %v750
  %1010 = vmatpush1.bf16.msra.mxu0 %v749
  %1011 = vmatprep.subr.bf16.mxu0 %v754
  %1012 = vmatpush1.bf16.msra.mxu0 %v753
  %1013 = vmatprep.subr.bf16.mxu0 %v758
  %1014 = vmatpush1.bf16.msra.mxu0 %v757
  %1015 = vmatprep.subr.bf16.mxu0 %v762
  %1016 = vmatpush1.bf16.msra.mxu0 %v761
  %1017 = vmatprep.subr.bf16.mxu0 %v766
  %1018 = vmatpush1.bf16.msra.mxu0 %v765
  %1019 = vmatprep.subr.bf16.mxu0 0
  %1020 = vmatpush1.bf16.msra.mxu0 0
  %1021 = vmatprep.subr.bf16.mxu0 0
  %1022 = vmatpush1.bf16.msra.mxu0 0
  %1023 = vmatprep.subr.bf16.mxu0 0
  %1024 = vmatpush1.bf16.msra.mxu0 0
  %1025 = vmatprep.subr.bf16.mxu0 0
  %1026 = vmatpush1.bf16.msra.mxu0 0
  %1027 = vmatprep.subr.bf16.mxu0 0
  %1028 = vmatpush1.bf16.msra.mxu0 0
  %1029 = vmatprep.subr.bf16.mxu0 0
  %1030 = vmatpush1.bf16.msra.mxu0 0
  %1031 = vmatprep.subr.bf16.mxu0 0
  %1032 = vmatpush1.bf16.msra.mxu0 0
  %1033 = vmatprep.subr.bf16.mxu0 0
  %1034 = vmatpush1.bf16.msra.mxu0 0
  %1035 = vmatprep.mubr.bf16.mxu0 0
  %1036 = vmatmul.mubr.bf16.gmra.mrb[0].mxu0 %v941
  %v1037 = vpop.f32.mrb[0].mxu0
  %v1038 = vadd.f32 0.0, %v1037
  %v1039 = vpop.f32.mrb[0].mxu0
  %v1040 = vadd.f32 0.0, %v1039
  %v1041 = vpop.f32.mrb[0].mxu0
  %v1042 = vadd.f32 0.0, %v1041
  %v1043 = vpop.f32.mrb[0].mxu0
  %v1044 = vadd.f32 0.0, %v1043
  %1045 = vdwg.mxu0
  %v1046 = vadd.f32 %v952, %v995
  %v1047 = vadd.f32 %v953, %v997
  %v1048 = vadd.f32 %v954, %v1038
  %v1049 = vadd.f32 %v955, %v1040
  %v1050 = vadd.f32 %v956, %v999
  %v1051 = vadd.f32 %v957, %v1001
  %v1052 = vadd.f32 %v958, %v1042
  %v1053 = vadd.f32 %v959, %v1044
  %v1054 = vxor.u32 %v1046, 2147483648
  %v1055 = vxor.u32 %v1050, 2147483648
  %v1056 = vmul.f32 %v1054, 1.442695
  %v1057 = vpow.pop %v1056
  %v1058 = vmul.f32 %v1055, 1.442695
  %v1059 = vpow.pop %v1058
  %v1060 = vadd.f32 %v1057, 1.0
  %v1061 = vadd.f32 %v1059, 1.0
  %v1062 = vrcp.pop %v1060
  %v1063 = vmul.f32 1.0, %v1062
  %v1064 = vrcp.pop %v1061
  %v1065 = vmul.f32 1.0, %v1064
  %v1066 = vxor.u32 %v1047, 2147483648
  %v1067 = vxor.u32 %v1051, 2147483648
  %v1068 = vmul.f32 %v1066, 1.442695
  %v1069 = vpow.pop %v1068
  %v1070 = vmul.f32 %v1067, 1.442695
  %v1071 = vpow.pop %v1070
  %v1072 = vadd.f32 %v1069, 1.0
  %v1073 = vadd.f32 %v1071, 1.0
  %v1074 = vrcp.pop %v1072
  %v1075 = vmul.f32 1.0, %v1074
  %v1076 = vrcp.pop %v1073
  %v1077 = vmul.f32 1.0, %v1076
  %v1078 = vtanh.pop %v1048
  %v1079 = vtanh.pop %v1052
  %v1080 = vxor.u32 %v1049, 2147483648
  %v1081 = vxor.u32 %v1053, 2147483648
  %v1082 = vmul.f32 %v1080, 1.442695
  %v1083 = vpow.pop %v1082
  %v1084 = vmul.f32 %v1081, 1.442695
  %v1085 = vpow.pop %v1084
  %v1086 = vadd.f32 %v1083, 1.0
  %v1087 = vadd.f32 %v1085, 1.0
  %v1088 = vrcp.pop %v1086
  %v1089 = vmul.f32 1.0, %v1088
  %v1090 = vrcp.pop %v1087
  %v1091 = vmul.f32 1.0, %v1090
  %v1092 = vmul.f32 %v1075, %v935
  %v1093 = vmul.f32 %v1077, %v936
  %v1094 = vmul.f32 %v1063, %v1078
  %v1095 = vmul.f32 %v1065, %v1079
  %v1096 = vadd.f32 %v1092, %v1094
  %v1097 = vadd.f32 %v1093, %v1095
  %v1098 = vtanh.pop %v1096
  %v1099 = vtanh.pop %v1097
  %v1100 = vmul.f32 %v1089, %v1098
  %v1101 = vmul.f32 %v1091, %v1099
  %v1102 = vpack.c.bf16 %v1101, %v1100
  %v1104 = vunpack.c.l.b16 %v1102
  %v1105 = vunpack.c.h.b16 %v1102
  %v1106 = vpack.c.b16 %v1104, %v1104
  %v1107 = vpack.c.b16 %v1105, %v1105
  %s1110 = scalar_lea.vmem %s4, 8
  %1111 = vst [vmem:[%s1110] sm:$0xf] %v1106
  %1112 = vst [vmem:[%s1110 + $0x4] sm:$0xf] %v1107
  %s1113 = scalar_lea.vmem [#allocation4], 128
  %v1114 = vld [vmem:[%s1113] sm:$0xff]
  %v1115 = vld [vmem:[%s1113 + $0x8] sm:$0xff]
  %v1116 = vld [vmem:[%s1113 + $0x10] sm:$0xff]
  %v1117 = vld [vmem:[%s1113 + $0x18] sm:$0xff]
  %v1118 = vld [vmem:[%s1113 + $0x20] sm:$0xff]
  %v1119 = vld [vmem:[%s1113 + $0x28] sm:$0xff]
  %v1120 = vld [vmem:[%s1113 + $0x30] sm:$0xff]
  %v1121 = vld [vmem:[%s1113 + $0x38] sm:$0xff]
  %1122 = vmatprep.subr.bf16.mxu0 %v736
  %1123 = vmatpush1.bf16.msra.mxu0 %v735
  %1124 = vmatprep.subr.bf16.mxu0 %v740
  %1125 = vmatpush1.bf16.msra.mxu0 %v739
  %1126 = vmatprep.subr.bf16.mxu0 %v744
  %1127 = vmatpush1.bf16.msra.mxu0 %v743
  %1128 = vmatprep.subr.bf16.mxu0 %v748
  %1129 = vmatpush1.bf16.msra.mxu0 %v747
  %1130 = vmatprep.subr.bf16.mxu0 %v752
  %1131 = vmatpush1.bf16.msra.mxu0 %v751
  %1132 = vmatprep.subr.bf16.mxu0 %v756
  %1133 = vmatpush1.bf16.msra.mxu0 %v755
  %1134 = vmatprep.subr.bf16.mxu0 %v760
  %1135 = vmatpush1.bf16.msra.mxu0 %v759
  %1136 = vmatprep.subr.bf16.mxu0 %v764
  %1137 = vmatpush1.bf16.msra.mxu0 %v763
  %1138 = vmatprep.subr.bf16.mxu0 0
  %1139 = vmatpush1.bf16.msra.mxu0 0
  %1140 = vmatprep.subr.bf16.mxu0 0
  %1141 = vmatpush1.bf16.msra.mxu0 0
  %1142 = vmatprep.subr.bf16.mxu0 0
  %1143 = vmatpush1.bf16.msra.mxu0 0
  %1144 = vmatprep.subr.bf16.mxu0 0
  %1145 = vmatpush1.bf16.msra.mxu0 0
  %1146 = vmatprep.subr.bf16.mxu0 0
  %1147 = vmatpush1.bf16.msra.mxu0 0
  %1148 = vmatprep.subr.bf16.mxu0 0
  %1149 = vmatpush1.bf16.msra.mxu0 0
  %1150 = vmatprep.subr.bf16.mxu0 0
  %1151 = vmatpush1.bf16.msra.mxu0 0
  %1152 = vmatprep.subr.bf16.mxu0 0
  %1153 = vmatpush1.bf16.msra.mxu0 0
  %1154 = vmatprep.mubr.bf16.mxu0 0
  %1155 = vmatmul.mubr.bf16.gmra.mrb[0].mxu0 %v1102
  %v1156 = vpop.f32.mrb[0].mxu0
  %v1157 = vadd.f32 0.0, %v1156
  %v1158 = vpop.f32.mrb[0].mxu0
  %v1159 = vadd.f32 0.0, %v1158
  %v1160 = vpop.f32.mrb[0].mxu0
  %v1161 = vadd.f32 0.0, %v1160
  %v1162 = vpop.f32.mrb[0].mxu0
  %v1163 = vadd.f32 0.0, %v1162
  %1164 = vdwg.mxu0
  %1165 = vmatprep.subr.bf16.mxu0 %v738
  %1166 = vmatpush1.bf16.msra.mxu0 %v737
  %1167 = vmatprep.subr.bf16.mxu0 %v742
  %1168 = vmatpush1.bf16.msra.mxu0 %v741
  %1169 = vmatprep.subr.bf16.mxu0 %v746
  %1170 = vmatpush1.bf16.msra.mxu0 %v745
  %1171 = vmatprep.subr.bf16.mxu0 %v750
  %1172 = vmatpush1.bf16.msra.mxu0 %v749
  %1173 = vmatprep.subr.bf16.mxu0 %v754
  %1174 = vmatpush1.bf16.msra.mxu0 %v753
  %1175 = vmatprep.subr.bf16.mxu0 %v758
  %1176 = vmatpush1.bf16.msra.mxu0 %v757
  %1177 = vmatprep.subr.bf16.mxu0 %v762
  %1178 = vmatpush1.bf16.msra.mxu0 %v761
  %1179 = vmatprep.subr.bf16.mxu0 %v766
  %1180 = vmatpush1.bf16.msra.mxu0 %v765
  %1181 = vmatprep.subr.bf16.mxu0 0
  %1182 = vmatpush1.bf16.msra.mxu0 0
  %1183 = vmatprep.subr.bf16.mxu0 0
  %1184 = vmatpush1.bf16.msra.mxu0 0
  %1185 = vmatprep.subr.bf16.mxu0 0
  %1186 = vmatpush1.bf16.msra.mxu0 0
  %1187 = vmatprep.subr.bf16.mxu0 0
  %1188 = vmatpush1.bf16.msra.mxu0 0
  %1189 = vmatprep.subr.bf16.mxu0 0
  %1190 = vmatpush1.bf16.msra.mxu0 0
  %1191 = vmatprep.subr.bf16.mxu0 0
  %1192 = vmatpush1.bf16.msra.mxu0 0
  %1193 = vmatprep.subr.bf16.mxu0 0
  %1194 = vmatpush1.bf16.msra.mxu0 0
  %1195 = vmatprep.subr.bf16.mxu0 0
  %1196 = vmatpush1.bf16.msra.mxu0 0
  %1197 = vmatprep.mubr.bf16.mxu0 0
  %1198 = vmatmul.mubr.bf16.gmra.mrb[0].mxu0 %v1102
  %v1199 = vpop.f32.mrb[0].mxu0
  %v1200 = vadd.f32 0.0, %v1199
  %v1201 = vpop.f32.mrb[0].mxu0
  %v1202 = vadd.f32 0.0, %v1201
  %v1203 = vpop.f32.mrb[0].mxu0
  %v1204 = vadd.f32 0.0, %v1203
  %v1205 = vpop.f32.mrb[0].mxu0
  %v1206 = vadd.f32 0.0, %v1205
  %1207 = vdwg.mxu0
  %v1208 = vadd.f32 %v1114, %v1157
  %v1209 = vadd.f32 %v1115, %v1159
  %v1210 = vadd.f32 %v1116, %v1200
  %v1211 = vadd.f32 %v1117, %v1202
  %v1212 = vadd.f32 %v1118, %v1161
  %v1213 = vadd.f32 %v1119, %v1163
  %v1214 = vadd.f32 %v1120, %v1204
  %v1215 = vadd.f32 %v1121, %v1206
  %v1216 = vxor.u32 %v1208, 2147483648
  %v1217 = vxor.u32 %v1212, 2147483648
  %v1218 = vmul.f32 %v1216, 1.442695
  %v1219 = vpow.pop %v1218
  %v1220 = vmul.f32 %v1217, 1.442695
  %v1221 = vpow.pop %v1220
  %v1222 = vadd.f32 %v1219, 1.0
  %v1223 = vadd.f32 %v1221, 1.0
  %v1224 = vrcp.pop %v1222
  %v1225 = vmul.f32 1.0, %v1224
  %v1226 = vrcp.pop %v1223
  %v1227 = vmul.f32 1.0, %v1226
  %v1228 = vxor.u32 %v1209, 2147483648
  %v1229 = vxor.u32 %v1213, 2147483648
  %v1230 = vmul.f32 %v1228, 1.442695
  %v1231 = vpow.pop %v1230
  %v1232 = vmul.f32 %v1229, 1.442695
  %v1233 = vpow.pop %v1232
  %v1234 = vadd.f32 %v1231, 1.0
  %v1235 = vadd.f32 %v1233, 1.0
  %v1236 = vrcp.pop %v1234
  %v1237 = vmul.f32 1.0, %v1236
  %v1238 = vrcp.pop %v1235
  %v1239 = vmul.f32 1.0, %v1238
  %v1240 = vtanh.pop %v1210
  %v1241 = vtanh.pop %v1214
  %v1242 = vxor.u32 %v1211, 2147483648
  %v1243 = vxor.u32 %v1215, 2147483648
  %v1244 = vmul.f32 %v1242, 1.442695
  %v1245 = vpow.pop %v1244
  %v1246 = vmul.f32 %v1243, 1.442695
  %v1247 = vpow.pop %v1246
  %v1248 = vadd.f32 %v1245, 1.0
  %v1249 = vadd.f32 %v1247, 1.0
  %v1250 = vrcp.pop %v1248
  %v1251 = vmul.f32 1.0, %v1250
  %v1252 = vrcp.pop %v1249
  %v1253 = vmul.f32 1.0, %v1252
  %v1254 = vmul.f32 %v1237, %v1096
  %v1255 = vmul.f32 %v1239, %v1097
  %v1256 = vmul.f32 %v1225, %v1240
  %v1257 = vmul.f32 %v1227, %v1241
  %v1258 = vadd.f32 %v1254, %v1256
  %v1259 = vadd.f32 %v1255, %v1257
  %v1260 = vtanh.pop %v1258
  %v1261 = vtanh.pop %v1259
  %v1262 = vmul.f32 %v1251, %v1260
  %v1263 = vmul.f32 %v1253, %v1261
  %v1264 = vpack.c.bf16 %v1263, %v1262
  %v1266 = vunpack.c.l.b16 %v1264
  %v1267 = vunpack.c.h.b16 %v1264
  %v1268 = vpack.c.b16 %v1266, %v1266
  %v1269 = vpack.c.b16 %v1267, %v1267
  %s1272 = scalar_lea.vmem %s4, 16
  %1273 = vst [vmem:[%s1272] sm:$0xf] %v1268
  %1274 = vst [vmem:[%s1272 + $0x4] sm:$0xf] %v1269
  %s1275 = scalar_lea.vmem [#allocation4], 192
  %v1276 = vld [vmem:[%s1275] sm:$0xff]
  %v1277 = vld [vmem:[%s1275 + $0x8] sm:$0xff]
  %v1278 = vld [vmem:[%s1275 + $0x10] sm:$0xff]
  %v1279 = vld [vmem:[%s1275 + $0x18] sm:$0xff]
  %v1280 = vld [vmem:[%s1275 + $0x20] sm:$0xff]
  %v1281 = vld [vmem:[%s1275 + $0x28] sm:$0xff]
  %v1282 = vld [vmem:[%s1275 + $0x30] sm:$0xff]
  %v1283 = vld [vmem:[%s1275 + $0x38] sm:$0xff]
  %1284 = vmatprep.subr.bf16.mxu0 %v736
  %1285 = vmatpush1.bf16.msra.mxu0 %v735
  %1286 = vmatprep.subr.bf16.mxu0 %v740
  %1287 = vmatpush1.bf16.msra.mxu0 %v739
  %1288 = vmatprep.subr.bf16.mxu0 %v744
  %1289 = vmatpush1.bf16.msra.mxu0 %v743
  %1290 = vmatprep.subr.bf16.mxu0 %v748
  %1291 = vmatpush1.bf16.msra.mxu0 %v747
  %1292 = vmatprep.subr.bf16.mxu0 %v752
  %1293 = vmatpush1.bf16.msra.mxu0 %v751
  %1294 = vmatprep.subr.bf16.mxu0 %v756
  %1295 = vmatpush1.bf16.msra.mxu0 %v755
  %1296 = vmatprep.subr.bf16.mxu0 %v760
  %1297 = vmatpush1.bf16.msra.mxu0 %v759
  %1298 = vmatprep.subr.bf16.mxu0 %v764
  %1299 = vmatpush1.bf16.msra.mxu0 %v763
  %1300 = vmatprep.subr.bf16.mxu0 0
  %1301 = vmatpush1.bf16.msra.mxu0 0
  %1302 = vmatprep.subr.bf16.mxu0 0
  %1303 = vmatpush1.bf16.msra.mxu0 0
  %1304 = vmatprep.subr.bf16.mxu0 0
  %1305 = vmatpush1.bf16.msra.mxu0 0
  %1306 = vmatprep.subr.bf16.mxu0 0
  %1307 = vmatpush1.bf16.msra.mxu0 0
  %1308 = vmatprep.subr.bf16.mxu0 0
  %1309 = vmatpush1.bf16.msra.mxu0 0
  %1310 = vmatprep.subr.bf16.mxu0 0
  %1311 = vmatpush1.bf16.msra.mxu0 0
  %1312 = vmatprep.subr.bf16.mxu0 0
  %1313 = vmatpush1.bf16.msra.mxu0 0
  %1314 = vmatprep.subr.bf16.mxu0 0
  %1315 = vmatpush1.bf16.msra.mxu0 0
  %1316 = vmatprep.mubr.bf16.mxu0 0
  %1317 = vmatmul.mubr.bf16.gmra.mrb[0].mxu0 %v1264
  %v1318 = vpop.f32.mrb[0].mxu0
  %v1319 = vadd.f32 0.0, %v1318
  %v1320 = vpop.f32.mrb[0].mxu0
  %v1321 = vadd.f32 0.0, %v1320
  %v1322 = vpop.f32.mrb[0].mxu0
  %v1323 = vadd.f32 0.0, %v1322
  %v1324 = vpop.f32.mrb[0].mxu0
  %v1325 = vadd.f32 0.0, %v1324
  %1326 = vdwg.mxu0
  %1327 = vmatprep.subr.bf16.mxu0 %v738
  %1328 = vmatpush1.bf16.msra.mxu0 %v737
  %1329 = vmatprep.subr.bf16.mxu0 %v742
  %1330 = vmatpush1.bf16.msra.mxu0 %v741
  %1331 = vmatprep.subr.bf16.mxu0 %v746
  %1332 = vmatpush1.bf16.msra.mxu0 %v745
  %1333 = vmatprep.subr.bf16.mxu0 %v750
  %1334 = vmatpush1.bf16.msra.mxu0 %v749
  %1335 = vmatprep.subr.bf16.mxu0 %v754
  %1336 = vmatpush1.bf16.msra.mxu0 %v753
  %1337 = vmatprep.subr.bf16.mxu0 %v758
  %1338 = vmatpush1.bf16.msra.mxu0 %v757
  %1339 = vmatprep.subr.bf16.mxu0 %v762
  %1340 = vmatpush1.bf16.msra.mxu0 %v761
  %1341 = vmatprep.subr.bf16.mxu0 %v766
  %1342 = vmatpush1.bf16.msra.mxu0 %v765
  %1343 = vmatprep.subr.bf16.mxu0 0
  %1344 = vmatpush1.bf16.msra.mxu0 0
  %1345 = vmatprep.subr.bf16.mxu0 0
  %1346 = vmatpush1.bf16.msra.mxu0 0
  %1347 = vmatprep.subr.bf16.mxu0 0
  %1348 = vmatpush1.bf16.msra.mxu0 0
  %1349 = vmatprep.subr.bf16.mxu0 0
  %1350 = vmatpush1.bf16.msra.mxu0 0
  %1351 = vmatprep.subr.bf16.mxu0 0
  %1352 = vmatpush1.bf16.msra.mxu0 0
  %1353 = vmatprep.subr.bf16.mxu0 0
  %1354 = vmatpush1.bf16.msra.mxu0 0
  %1355 = vmatprep.subr.bf16.mxu0 0
  %1356 = vmatpush1.bf16.msra.mxu0 0
  %1357 = vmatprep.subr.bf16.mxu0 0
  %1358 = vmatpush1.bf16.msra.mxu0 0
  %1359 = vmatprep.mubr.bf16.mxu0 0
  %1360 = vmatmul.mubr.bf16.gmra.mrb[0].mxu0 %v1264
  %v1361 = vpop.f32.mrb[0].mxu0
  %v1362 = vadd.f32 0.0, %v1361
  %v1363 = vpop.f32.mrb[0].mxu0
  %v1364 = vadd.f32 0.0, %v1363
  %v1365 = vpop.f32.mrb[0].mxu0
  %v1366 = vadd.f32 0.0, %v1365
  %v1367 = vpop.f32.mrb[0].mxu0
  %v1368 = vadd.f32 0.0, %v1367
  %1369 = vdwg.mxu0
  %v1370 = vadd.f32 %v1276, %v1319
  %v1371 = vadd.f32 %v1277, %v1321
  %v1372 = vadd.f32 %v1278, %v1362
  %v1373 = vadd.f32 %v1279, %v1364
  %v1374 = vadd.f32 %v1280, %v1323
  %v1375 = vadd.f32 %v1281, %v1325
  %v1376 = vadd.f32 %v1282, %v1366
  %v1377 = vadd.f32 %v1283, %v1368
  %v1378 = vxor.u32 %v1370, 2147483648
  %v1379 = vxor.u32 %v1374, 2147483648
  %v1380 = vmul.f32 %v1378, 1.442695
  %v1381 = vpow.pop %v1380
  %v1382 = vmul.f32 %v1379, 1.442695
  %v1383 = vpow.pop %v1382
  %v1384 = vadd.f32 %v1381, 1.0
  %v1385 = vadd.f32 %v1383, 1.0
  %v1386 = vrcp.pop %v1384
  %v1387 = vmul.f32 1.0, %v1386
  %v1388 = vrcp.pop %v1385
  %v1389 = vmul.f32 1.0, %v1388
  %v1390 = vxor.u32 %v1371, 2147483648
  %v1391 = vxor.u32 %v1375, 2147483648
  %v1392 = vmul.f32 %v1390, 1.442695
  %v1393 = vpow.pop %v1392
  %v1394 = vmul.f32 %v1391, 1.442695
  %v1395 = vpow.pop %v1394
  %v1396 = vadd.f32 %v1393, 1.0
  %v1397 = vadd.f32 %v1395, 1.0
  %v1398 = vrcp.pop %v1396
  %v1399 = vmul.f32 1.0, %v1398
  %v1400 = vrcp.pop %v1397
  %v1401 = vmul.f32 1.0, %v1400
  %v1402 = vtanh.pop %v1372
  %v1403 = vtanh.pop %v1376
  %v1404 = vxor.u32 %v1373, 2147483648
  %v1405 = vxor.u32 %v1377, 2147483648
  %v1406 = vmul.f32 %v1404, 1.442695
  %v1407 = vpow.pop %v1406
  %v1408 = vmul.f32 %v1405, 1.442695
  %v1409 = vpow.pop %v1408
  %v1410 = vadd.f32 %v1407, 1.0
  %v1411 = vadd.f32 %v1409, 1.0
  %v1412 = vrcp.pop %v1410
  %v1413 = vmul.f32 1.0, %v1412
  %v1414 = vrcp.pop %v1411
  %v1415 = vmul.f32 1.0, %v1414
  %v1416 = vmul.f32 %v1399, %v1258
  %v1417 = vmul.f32 %v1401, %v1259
  %v1418 = vmul.f32 %v1387, %v1402
  %v1419 = vmul.f32 %v1389, %v1403
  %v1420 = vadd.f32 %v1416, %v1418
  %v1421 = vadd.f32 %v1417, %v1419
  %v1422 = vtanh.pop %v1420
  %v1423 = vtanh.pop %v1421
  %v1424 = vmul.f32 %v1413, %v1422
  %v1425 = vmul.f32 %v1415, %v1423
  %v1426 = vpack.c.bf16 %v1425, %v1424
  %v1428 = vunpack.c.l.b16 %v1426
  %v1429 = vunpack.c.h.b16 %v1426
  %v1430 = vpack.c.b16 %v1428, %v1428
  %v1431 = vpack.c.b16 %v1429, %v1429
  %s1434 = scalar_lea.vmem %s4, 24
  %1435 = vst [vmem:[%s1434] sm:$0xf] %v1430
  %1436 = vst [vmem:[%s1434 + $0x4] sm:$0xf] %v1431
  %s1437 = scalar_lea.vmem [#allocation4], 256
  %v1438 = vld [vmem:[%s1437] sm:$0xff]
  %v1439 = vld [vmem:[%s1437 + $0x8] sm:$0xff]
  %v1440 = vld [vmem:[%s1437 + $0x10] sm:$0xff]
  %v1441 = vld [vmem:[%s1437 + $0x18] sm:$0xff]
  %v1442 = vld [vmem:[%s1437 + $0x20] sm:$0xff]
  %v1443 = vld [vmem:[%s1437 + $0x28] sm:$0xff]
  %v1444 = vld [vmem:[%s1437 + $0x30] sm:$0xff]
  %v1445 = vld [vmem:[%s1437 + $0x38] sm:$0xff]
  %1446 = vmatprep.subr.bf16.mxu0 %v736
  %1447 = vmatpush1.bf16.msra.mxu0 %v735
  %1448 = vmatprep.subr.bf16.mxu0 %v740
  %1449 = vmatpush1.bf16.msra.mxu0 %v739
  %1450 = vmatprep.subr.bf16.mxu0 %v744
  %1451 = vmatpush1.bf16.msra.mxu0 %v743
  %1452 = vmatprep.subr.bf16.mxu0 %v748
  %1453 = vmatpush1.bf16.msra.mxu0 %v747
  %1454 = vmatprep.subr.bf16.mxu0 %v752
  %1455 = vmatpush1.bf16.msra.mxu0 %v751
  %1456 = vmatprep.subr.bf16.mxu0 %v756
  %1457 = vmatpush1.bf16.msra.mxu0 %v755
  %1458 = vmatprep.subr.bf16.mxu0 %v760
  %1459 = vmatpush1.bf16.msra.mxu0 %v759
  %1460 = vmatprep.subr.bf16.mxu0 %v764
  %1461 = vmatpush1.bf16.msra.mxu0 %v763
  %1462 = vmatprep.subr.bf16.mxu0 0
  %1463 = vmatpush1.bf16.msra.mxu0 0
  %1464 = vmatprep.subr.bf16.mxu0 0
  %1465 = vmatpush1.bf16.msra.mxu0 0
  %1466 = vmatprep.subr.bf16.mxu0 0
  %1467 = vmatpush1.bf16.msra.mxu0 0
  %1468 = vmatprep.subr.bf16.mxu0 0
  %1469 = vmatpush1.bf16.msra.mxu0 0
  %1470 = vmatprep.subr.bf16.mxu0 0
  %1471 = vmatpush1.bf16.msra.mxu0 0
  %1472 = vmatprep.subr.bf16.mxu0 0
  %1473 = vmatpush1.bf16.msra.mxu0 0
  %1474 = vmatprep.subr.bf16.mxu0 0
  %1475 = vmatpush1.bf16.msra.mxu0 0
  %1476 = vmatprep.subr.bf16.mxu0 0
  %1477 = vmatpush1.bf16.msra.mxu0 0
  %1478 = vmatprep.mubr.bf16.mxu0 0
  %1479 = vmatmul.mubr.bf16.gmra.mrb[0].mxu0 %v1426
  %v1480 = vpop.f32.mrb[0].mxu0
  %v1481 = vadd.f32 0.0, %v1480
  %v1482 = vpop.f32.mrb[0].mxu0
  %v1483 = vadd.f32 0.0, %v1482
  %v1484 = vpop.f32.mrb[0].mxu0
  %v1485 = vadd.f32 0.0, %v1484
  %v1486 = vpop.f32.mrb[0].mxu0
  %v1487 = vadd.f32 0.0, %v1486
  %1488 = vdwg.mxu0
  %1489 = vmatprep.subr.bf16.mxu0 %v738
  %1490 = vmatpush1.bf16.msra.mxu0 %v737
  %1491 = vmatprep.subr.bf16.mxu0 %v742
  %1492 = vmatpush1.bf16.msra.mxu0 %v741
  %1493 = vmatprep.subr.bf16.mxu0 %v746
  %1494 = vmatpush1.bf16.msra.mxu0 %v745
  %1495 = vmatprep.subr.bf16.mxu0 %v750
  %1496 = vmatpush1.bf16.msra.mxu0 %v749
  %1497 = vmatprep.subr.bf16.mxu0 %v754
  %1498 = vmatpush1.bf16.msra.mxu0 %v753
  %1499 = vmatprep.subr.bf16.mxu0 %v758
  %1500 = vmatpush1.bf16.msra.mxu0 %v757
  %1501 = vmatprep.subr.bf16.mxu0 %v762
  %1502 = vmatpush1.bf16.msra.mxu0 %v761
  %1503 = vmatprep.subr.bf16.mxu0 %v766
  %1504 = vmatpush1.bf16.msra.mxu0 %v765
  %1505 = vmatprep.subr.bf16.mxu0 0
  %1506 = vmatpush1.bf16.msra.mxu0 0
  %1507 = vmatprep.subr.bf16.mxu0 0
  %1508 = vmatpush1.bf16.msra.mxu0 0
  %1509 = vmatprep.subr.bf16.mxu0 0
  %1510 = vmatpush1.bf16.msra.mxu0 0
  %1511 = vmatprep.subr.bf16.mxu0 0
  %1512 = vmatpush1.bf16.msra.mxu0 0
  %1513 = vmatprep.subr.bf16.mxu0 0
  %1514 = vmatpush1.bf16.msra.mxu0 0
  %1515 = vmatprep.subr.bf16.mxu0 0
  %1516 = vmatpush1.bf16.msra.mxu0 0
  %1517 = vmatprep.subr.bf16.mxu0 0
  %1518 = vmatpush1.bf16.msra.mxu0 0
  %1519 = vmatprep.subr.bf16.mxu0 0
  %1520 = vmatpush1.bf16.msra.mxu0 0
  %1521 = vmatprep.mubr.bf16.mxu0 0
  %1522 = vmatmul.mubr.bf16.gmra.mrb[0].mxu0 %v1426
  %v1523 = vpop.f32.mrb[0].mxu0
  %v1524 = vadd.f32 0.0, %v1523
  %v1525 = vpop.f32.mrb[0].mxu0
  %v1526 = vadd.f32 0.0, %v1525
  %v1527 = vpop.f32.mrb[0].mxu0
  %v1528 = vadd.f32 0.0, %v1527
  %v1529 = vpop.f32.mrb[0].mxu0
  %v1530 = vadd.f32 0.0, %v1529
  %1531 = vdwg.mxu0
  %v1532 = vadd.f32 %v1438, %v1481
  %v1533 = vadd.f32 %v1439, %v1483
  %v1534 = vadd.f32 %v1440, %v1524
  %v1535 = vadd.f32 %v1441, %v1526
  %v1536 = vadd.f32 %v1442, %v1485
  %v1537 = vadd.f32 %v1443, %v1487
  %v1538 = vadd.f32 %v1444, %v1528
  %v1539 = vadd.f32 %v1445, %v1530
  %v1540 = vxor.u32 %v1532, 2147483648
  %v1541 = vxor.u32 %v1536, 2147483648
  %v1542 = vmul.f32 %v1540, 1.442695
  %v1543 = vpow.pop %v1542
  %v1544 = vmul.f32 %v1541, 1.442695
  %v1545 = vpow.pop %v1544
  %v1546 = vadd.f32 %v1543, 1.0
  %v1547 = vadd.f32 %v1545, 1.0
  %v1548 = vrcp.pop %v1546
  %v1549 = vmul.f32 1.0, %v1548
  %v1550 = vrcp.pop %v1547
  %v1551 = vmul.f32 1.0, %v1550
  %v1552 = vxor.u32 %v1533, 2147483648
  %v1553 = vxor.u32 %v1537, 2147483648
  %v1554 = vmul.f32 %v1552, 1.442695
  %v1555 = vpow.pop %v1554
  %v1556 = vmul.f32 %v1553, 1.442695
  %v1557 = vpow.pop %v1556
  %v1558 = vadd.f32 %v1555, 1.0
  %v1559 = vadd.f32 %v1557, 1.0
  %v1560 = vrcp.pop %v1558
  %v1561 = vmul.f32 1.0, %v1560
  %v1562 = vrcp.pop %v1559
  %v1563 = vmul.f32 1.0, %v1562
  %v1564 = vtanh.pop %v1534
  %v1565 = vtanh.pop %v1538
  %v1566 = vxor.u32 %v1535, 2147483648
  %v1567 = vxor.u32 %v1539, 2147483648
  %v1568 = vmul.f32 %v1566, 1.442695
  %v1569 = vpow.pop %v1568
  %v1570 = vmul.f32 %v1567, 1.442695
  %v1571 = vpow.pop %v1570
  %v1572 = vadd.f32 %v1569, 1.0
  %v1573 = vadd.f32 %v1571, 1.0
  %v1574 = vrcp.pop %v1572
  %v1575 = vmul.f32 1.0, %v1574
  %v1576 = vrcp.pop %v1573
  %v1577 = vmul.f32 1.0, %v1576
  %v1578 = vmul.f32 %v1561, %v1420
  %v1579 = vmul.f32 %v1563, %v1421
  %v1580 = vmul.f32 %v1549, %v1564
  %v1581 = vmul.f32 %v1551, %v1565
  %v1582 = vadd.f32 %v1578, %v1580
  %v1583 = vadd.f32 %v1579, %v1581
  %v1584 = vtanh.pop %v1582
  %v1585 = vtanh.pop %v1583
  %v1586 = vmul.f32 %v1575, %v1584
  %v1587 = vmul.f32 %v1577, %v1585
  %v1588 = vpack.c.bf16 %v1587, %v1586
  %v1590 = vunpack.c.l.b16 %v1588
  %v1591 = vunpack.c.h.b16 %v1588
  %v1592 = vpack.c.b16 %v1590, %v1590
  %v1593 = vpack.c.b16 %v1591, %v1591
  %s1596 = scalar_lea.vmem %s4, 32
  %1597 = vst [vmem:[%s1596] sm:$0xf] %v1592
  %1598 = vst [vmem:[%s1596 + $0x4] sm:$0xf] %v1593
  %s1599 = scalar_lea.vmem [#allocation4], 320
  %v1600 = vld [vmem:[%s1599] sm:$0xff]
  %v1601 = vld [vmem:[%s1599 + $0x8] sm:$0xff]
  %v1602 = vld [vmem:[%s1599 + $0x10] sm:$0xff]
  %v1603 = vld [vmem:[%s1599 + $0x18] sm:$0xff]
  %v1604 = vld [vmem:[%s1599 + $0x20] sm:$0xff]
  %v1605 = vld [vmem:[%s1599 + $0x28] sm:$0xff]
  %v1606 = vld [vmem:[%s1599 + $0x30] sm:$0xff]
  %v1607 = vld [vmem:[%s1599 + $0x38] sm:$0xff]
  %1608 = vmatprep.subr.bf16.mxu0 %v736
  %1609 = vmatpush1.bf16.msra.mxu0 %v735
  %1610 = vmatprep.subr.bf16.mxu0 %v740
  %1611 = vmatpush1.bf16.msra.mxu0 %v739
  %1612 = vmatprep.subr.bf16.mxu0 %v744
  %1613 = vmatpush1.bf16.msra.mxu0 %v743
  %1614 = vmatprep.subr.bf16.mxu0 %v748
  %1615 = vmatpush1.bf16.msra.mxu0 %v747
  %1616 = vmatprep.subr.bf16.mxu0 %v752
  %1617 = vmatpush1.bf16.msra.mxu0 %v751
  %1618 = vmatprep.subr.bf16.mxu0 %v756
  %1619 = vmatpush1.bf16.msra.mxu0 %v755
  %1620 = vmatprep.subr.bf16.mxu0 %v760
  %1621 = vmatpush1.bf16.msra.mxu0 %v759
  %1622 = vmatprep.subr.bf16.mxu0 %v764
  %1623 = vmatpush1.bf16.msra.mxu0 %v763
  %1624 = vmatprep.subr.bf16.mxu0 0
  %1625 = vmatpush1.bf16.msra.mxu0 0
  %1626 = vmatprep.subr.bf16.mxu0 0
  %1627 = vmatpush1.bf16.msra.mxu0 0
  %1628 = vmatprep.subr.bf16.mxu0 0
  %1629 = vmatpush1.bf16.msra.mxu0 0
  %1630 = vmatprep.subr.bf16.mxu0 0
  %1631 = vmatpush1.bf16.msra.mxu0 0
  %1632 = vmatprep.subr.bf16.mxu0 0
  %1633 = vmatpush1.bf16.msra.mxu0 0
  %1634 = vmatprep.subr.bf16.mxu0 0
  %1635 = vmatpush1.bf16.msra.mxu0 0
  %1636 = vmatprep.subr.bf16.mxu0 0
  %1637 = vmatpush1.bf16.msra.mxu0 0
  %1638 = vmatprep.subr.bf16.mxu0 0
  %1639 = vmatpush1.bf16.msra.mxu0 0
  %1640 = vmatprep.mubr.bf16.mxu0 0
  %1641 = vmatmul.mubr.bf16.gmra.mrb[0].mxu0 %v1588
  %v1642 = vpop.f32.mrb[0].mxu0
  %v1643 = vadd.f32 0.0, %v1642
  %v1644 = vpop.f32.mrb[0].mxu0
  %v1645 = vadd.f32 0.0, %v1644
  %v1646 = vpop.f32.mrb[0].mxu0
  %v1647 = vadd.f32 0.0, %v1646
  %v1648 = vpop.f32.mrb[0].mxu0
  %v1649 = vadd.f32 0.0, %v1648
  %1650 = vdwg.mxu0
  %1651 = vmatprep.subr.bf16.mxu0 %v738
  %1652 = vmatpush1.bf16.msra.mxu0 %v737
  %1653 = vmatprep.subr.bf16.mxu0 %v742
  %1654 = vmatpush1.bf16.msra.mxu0 %v741
  %1655 = vmatprep.subr.bf16.mxu0 %v746
  %1656 = vmatpush1.bf16.msra.mxu0 %v745
  %1657 = vmatprep.subr.bf16.mxu0 %v750
  %1658 = vmatpush1.bf16.msra.mxu0 %v749
  %1659 = vmatprep.subr.bf16.mxu0 %v754
  %1660 = vmatpush1.bf16.msra.mxu0 %v753
  %1661 = vmatprep.subr.bf16.mxu0 %v758
  %1662 = vmatpush1.bf16.msra.mxu0 %v757
  %1663 = vmatprep.subr.bf16.mxu0 %v762
  %1664 = vmatpush1.bf16.msra.mxu0 %v761
  %1665 = vmatprep.subr.bf16.mxu0 %v766
  %1666 = vmatpush1.bf16.msra.mxu0 %v765
  %1667 = vmatprep.subr.bf16.mxu0 0
  %1668 = vmatpush1.bf16.msra.mxu0 0
  %1669 = vmatprep.subr.bf16.mxu0 0
  %1670 = vmatpush1.bf16.msra.mxu0 0
  %1671 = vmatprep.subr.bf16.mxu0 0
  %1672 = vmatpush1.bf16.msra.mxu0 0
  %1673 = vmatprep.subr.bf16.mxu0 0
  %1674 = vmatpush1.bf16.msra.mxu0 0
  %1675 = vmatprep.subr.bf16.mxu0 0
  %1676 = vmatpush1.bf16.msra.mxu0 0
  %1677 = vmatprep.subr.bf16.mxu0 0
  %1678 = vmatpush1.bf16.msra.mxu0 0
  %1679 = vmatprep.subr.bf16.mxu0 0
  %1680 = vmatpush1.bf16.msra.mxu0 0
  %1681 = vmatprep.subr.bf16.mxu0 0
  %1682 = vmatpush1.bf16.msra.mxu0 0
  %1683 = vmatprep.mubr.bf16.mxu0 0
  %1684 = vmatmul.mubr.bf16.gmra.mrb[0].mxu0 %v1588
  %v1685 = vpop.f32.mrb[0].mxu0
  %v1686 = vadd.f32 0.0, %v1685
  %v1687 = vpop.f32.mrb[0].mxu0
  %v1688 = vadd.f32 0.0, %v1687
  %v1689 = vpop.f32.mrb[0].mxu0
  %v1690 = vadd.f32 0.0, %v1689
  %v1691 = vpop.f32.mrb[0].mxu0
  %v1692 = vadd.f32 0.0, %v1691
  %1693 = vdwg.mxu0
  %v1694 = vadd.f32 %v1600, %v1643
  %v1695 = vadd.f32 %v1601, %v1645
  %v1696 = vadd.f32 %v1602, %v1686
  %v1697 = vadd.f32 %v1603, %v1688
  %v1698 = vadd.f32 %v1604, %v1647
  %v1699 = vadd.f32 %v1605, %v1649
  %v1700 = vadd.f32 %v1606, %v1690
  %v1701 = vadd.f32 %v1607, %v1692
  %v1702 = vxor.u32 %v1694, 2147483648
  %v1703 = vxor.u32 %v1698, 2147483648
  %v1704 = vmul.f32 %v1702, 1.442695
  %v1705 = vpow.pop %v1704
  %v1706 = vmul.f32 %v1703, 1.442695
  %v1707 = vpow.pop %v1706
  %v1708 = vadd.f32 %v1705, 1.0
  %v1709 = vadd.f32 %v1707, 1.0
  %v1710 = vrcp.pop %v1708
  %v1711 = vmul.f32 1.0, %v1710
  %v1712 = vrcp.pop %v1709
  %v1713 = vmul.f32 1.0, %v1712
  %v1714 = vxor.u32 %v1695, 2147483648
  %v1715 = vxor.u32 %v1699, 2147483648
  %v1716 = vmul.f32 %v1714, 1.442695
  %v1717 = vpow.pop %v1716
  %v1718 = vmul.f32 %v1715, 1.442695
  %v1719 = vpow.pop %v1718
  %v1720 = vadd.f32 %v1717, 1.0
  %v1721 = vadd.f32 %v1719, 1.0
  %v1722 = vrcp.pop %v1720
  %v1723 = vmul.f32 1.0, %v1722
  %v1724 = vrcp.pop %v1721
  %v1725 = vmul.f32 1.0, %v1724
  %v1726 = vtanh.pop %v1696
  %v1727 = vtanh.pop %v1700
  %v1728 = vxor.u32 %v1697, 2147483648
  %v1729 = vxor.u32 %v1701, 2147483648
  %v1730 = vmul.f32 %v1728, 1.442695
  %v1731 = vpow.pop %v1730
  %v1732 = vmul.f32 %v1729, 1.442695
  %v1733 = vpow.pop %v1732
  %v1734 = vadd.f32 %v1731, 1.0
  %v1735 = vadd.f32 %v1733, 1.0
  %v1736 = vrcp.pop %v1734
  %v1737 = vmul.f32 1.0, %v1736
  %v1738 = vrcp.pop %v1735
  %v1739 = vmul.f32 1.0, %v1738
  %v1740 = vmul.f32 %v1723, %v1582
  %v1741 = vmul.f32 %v1725, %v1583
  %v1742 = vmul.f32 %v1711, %v1726
  %v1743 = vmul.f32 %v1713, %v1727
  %v1744 = vadd.f32 %v1740, %v1742
  %v1745 = vadd.f32 %v1741, %v1743
  %v1746 = vtanh.pop %v1744
  %v1747 = vtanh.pop %v1745
  %v1748 = vmul.f32 %v1737, %v1746
  %v1749 = vmul.f32 %v1739, %v1747
  %v1750 = vpack.c.bf16 %v1749, %v1748
  %v1752 = vunpack.c.l.b16 %v1750
  %v1753 = vunpack.c.h.b16 %v1750
  %v1754 = vpack.c.b16 %v1752, %v1752
  %v1755 = vpack.c.b16 %v1753, %v1753
  %s1758 = scalar_lea.vmem %s4, 40
  %1759 = vst [vmem:[%s1758] sm:$0xf] %v1754
  %1760 = vst [vmem:[%s1758 + $0x4] sm:$0xf] %v1755
  %s1761 = scalar_lea.vmem [#allocation4], 384
  %v1762 = vld [vmem:[%s1761] sm:$0xff]
  %v1763 = vld [vmem:[%s1761 + $0x8] sm:$0xff]
  %v1764 = vld [vmem:[%s1761 + $0x10] sm:$0xff]
  %v1765 = vld [vmem:[%s1761 + $0x18] sm:$0xff]
  %v1766 = vld [vmem:[%s1761 + $0x20] sm:$0xff]
  %v1767 = vld [vmem:[%s1761 + $0x28] sm:$0xff]
  %v1768 = vld [vmem:[%s1761 + $0x30] sm:$0xff]
  %v1769 = vld [vmem:[%s1761 + $0x38] sm:$0xff]
  %1770 = vmatprep.subr.bf16.mxu0 %v736
  %1771 = vmatpush1.bf16.msra.mxu0 %v735
  %1772 = vmatprep.subr.bf16.mxu0 %v740
  %1773 = vmatpush1.bf16.msra.mxu0 %v739
  %1774 = vmatprep.subr.bf16.mxu0 %v744
  %1775 = vmatpush1.bf16.msra.mxu0 %v743
  %1776 = vmatprep.subr.bf16.mxu0 %v748
  %1777 = vmatpush1.bf16.msra.mxu0 %v747
  %1778 = vmatprep.subr.bf16.mxu0 %v752
  %1779 = vmatpush1.bf16.msra.mxu0 %v751
  %1780 = vmatprep.subr.bf16.mxu0 %v756
  %1781 = vmatpush1.bf16.msra.mxu0 %v755
  %1782 = vmatprep.subr.bf16.mxu0 %v760
  %1783 = vmatpush1.bf16.msra.mxu0 %v759
  %1784 = vmatprep.subr.bf16.mxu0 %v764
  %1785 = vmatpush1.bf16.msra.mxu0 %v763
  %1786 = vmatprep.subr.bf16.mxu0 0
  %1787 = vmatpush1.bf16.msra.mxu0 0
  %1788 = vmatprep.subr.bf16.mxu0 0
  %1789 = vmatpush1.bf16.msra.mxu0 0
  %1790 = vmatprep.subr.bf16.mxu0 0
  %1791 = vmatpush1.bf16.msra.mxu0 0
  %1792 = vmatprep.subr.bf16.mxu0 0
  %1793 = vmatpush1.bf16.msra.mxu0 0
  %1794 = vmatprep.subr.bf16.mxu0 0
  %1795 = vmatpush1.bf16.msra.mxu0 0
  %1796 = vmatprep.subr.bf16.mxu0 0
  %1797 = vmatpush1.bf16.msra.mxu0 0
  %1798 = vmatprep.subr.bf16.mxu0 0
  %1799 = vmatpush1.bf16.msra.mxu0 0
  %1800 = vmatprep.subr.bf16.mxu0 0
  %1801 = vmatpush1.bf16.msra.mxu0 0
  %1802 = vmatprep.mubr.bf16.mxu0 0
  %1803 = vmatmul.mubr.bf16.gmra.mrb[0].mxu0 %v1750
  %v1804 = vpop.f32.mrb[0].mxu0
  %v1805 = vadd.f32 0.0, %v1804
  %v1806 = vpop.f32.mrb[0].mxu0
  %v1807 = vadd.f32 0.0, %v1806
  %v1808 = vpop.f32.mrb[0].mxu0
  %v1809 = vadd.f32 0.0, %v1808
  %v1810 = vpop.f32.mrb[0].mxu0
  %v1811 = vadd.f32 0.0, %v1810
  %1812 = vdwg.mxu0
  %1813 = vmatprep.subr.bf16.mxu0 %v738
  %1814 = vmatpush1.bf16.msra.mxu0 %v737
  %1815 = vmatprep.subr.bf16.mxu0 %v742
  %1816 = vmatpush1.bf16.msra.mxu0 %v741
  %1817 = vmatprep.subr.bf16.mxu0 %v746
  %1818 = vmatpush1.bf16.msra.mxu0 %v745
  %1819 = vmatprep.subr.bf16.mxu0 %v750
  %1820 = vmatpush1.bf16.msra.mxu0 %v749
  %1821 = vmatprep.subr.bf16.mxu0 %v754
  %1822 = vmatpush1.bf16.msra.mxu0 %v753
  %1823 = vmatprep.subr.bf16.mxu0 %v758
  %1824 = vmatpush1.bf16.msra.mxu0 %v757
  %1825 = vmatprep.subr.bf16.mxu0 %v762
  %1826 = vmatpush1.bf16.msra.mxu0 %v761
  %1827 = vmatprep.subr.bf16.mxu0 %v766
  %1828 = vmatpush1.bf16.msra.mxu0 %v765
  %1829 = vmatprep.subr.bf16.mxu0 0
  %1830 = vmatpush1.bf16.msra.mxu0 0
  %1831 = vmatprep.subr.bf16.mxu0 0
  %1832 = vmatpush1.bf16.msra.mxu0 0
  %1833 = vmatprep.subr.bf16.mxu0 0
  %1834 = vmatpush1.bf16.msra.mxu0 0
  %1835 = vmatprep.subr.bf16.mxu0 0
  %1836 = vmatpush1.bf16.msra.mxu0 0
  %1837 = vmatprep.subr.bf16.mxu0 0
  %1838 = vmatpush1.bf16.msra.mxu0 0
  %1839 = vmatprep.subr.bf16.mxu0 0
  %1840 = vmatpush1.bf16.msra.mxu0 0
  %1841 = vmatprep.subr.bf16.mxu0 0
  %1842 = vmatpush1.bf16.msra.mxu0 0
  %1843 = vmatprep.subr.bf16.mxu0 0
  %1844 = vmatpush1.bf16.msra.mxu0 0
  %1845 = vmatprep.mubr.bf16.mxu0 0
  %1846 = vmatmul.mubr.bf16.gmra.mrb[0].mxu0 %v1750
  %v1847 = vpop.f32.mrb[0].mxu0
  %v1848 = vadd.f32 0.0, %v1847
  %v1849 = vpop.f32.mrb[0].mxu0
  %v1850 = vadd.f32 0.0, %v1849
  %v1851 = vpop.f32.mrb[0].mxu0
  %v1852 = vadd.f32 0.0, %v1851
  %v1853 = vpop.f32.mrb[0].mxu0
  %v1854 = vadd.f32 0.0, %v1853
  %1855 = vdwg.mxu0
  %v1856 = vadd.f32 %v1762, %v1805
  %v1857 = vadd.f32 %v1763, %v1807
  %v1858 = vadd.f32 %v1764, %v1848
  %v1859 = vadd.f32 %v1765, %v1850
  %v1860 = vadd.f32 %v1766, %v1809
  %v1861 = vadd.f32 %v1767, %v1811
  %v1862 = vadd.f32 %v1768, %v1852
  %v1863 = vadd.f32 %v1769, %v1854
  %v1864 = vxor.u32 %v1856, 2147483648
  %v1865 = vxor.u32 %v1860, 2147483648
  %v1866 = vmul.f32 %v1864, 1.442695
  %v1867 = vpow.pop %v1866
  %v1868 = vmul.f32 %v1865, 1.442695
  %v1869 = vpow.pop %v1868
  %v1870 = vadd.f32 %v1867, 1.0
  %v1871 = vadd.f32 %v1869, 1.0
  %v1872 = vrcp.pop %v1870
  %v1873 = vmul.f32 1.0, %v1872
  %v1874 = vrcp.pop %v1871
  %v1875 = vmul.f32 1.0, %v1874
  %v1876 = vxor.u32 %v1857, 2147483648
  %v1877 = vxor.u32 %v1861, 2147483648
  %v1878 = vmul.f32 %v1876, 1.442695
  %v1879 = vpow.pop %v1878
  %v1880 = vmul.f32 %v1877, 1.442695
  %v1881 = vpow.pop %v1880
  %v1882 = vadd.f32 %v1879, 1.0
  %v1883 = vadd.f32 %v1881, 1.0
  %v1884 = vrcp.pop %v1882
  %v1885 = vmul.f32 1.0, %v1884
  %v1886 = vrcp.pop %v1883
  %v1887 = vmul.f32 1.0, %v1886
  %v1888 = vtanh.pop %v1858
  %v1889 = vtanh.pop %v1862
  %v1890 = vxor.u32 %v1859, 2147483648
  %v1891 = vxor.u32 %v1863, 2147483648
  %v1892 = vmul.f32 %v1890, 1.442695
  %v1893 = vpow.pop %v1892
  %v1894 = vmul.f32 %v1891, 1.442695
  %v1895 = vpow.pop %v1894
  %v1896 = vadd.f32 %v1893, 1.0
  %v1897 = vadd.f32 %v1895, 1.0
  %v1898 = vrcp.pop %v1896
  %v1899 = vmul.f32 1.0, %v1898
  %v1900 = vrcp.pop %v1897
  %v1901 = vmul.f32 1.0, %v1900
  %v1902 = vmul.f32 %v1885, %v1744
  %v1903 = vmul.f32 %v1887, %v1745
  %v1904 = vmul.f32 %v1873, %v1888
  %v1905 = vmul.f32 %v1875, %v1889
  %v1906 = vadd.f32 %v1902, %v1904
  %v1907 = vadd.f32 %v1903, %v1905
  %v1908 = vtanh.pop %v1906
  %v1909 = vtanh.pop %v1907
  %v1910 = vmul.f32 %v1899, %v1908
  %v1911 = vmul.f32 %v1901, %v1909
  %v1912 = vpack.c.bf16 %v1911, %v1910
  %v1914 = vunpack.c.l.b16 %v1912
  %v1915 = vunpack.c.h.b16 %v1912
  %v1916 = vpack.c.b16 %v1914, %v1914
  %v1917 = vpack.c.b16 %v1915, %v1915
  %s1920 = scalar_lea.vmem %s4, 48
  %1921 = vst [vmem:[%s1920] sm:$0xf] %v1916
  %1922 = vst [vmem:[%s1920 + $0x4] sm:$0xf] %v1917
  %s1923 = scalar_lea.vmem [#allocation4], 448
  %v1924 = vld [vmem:[%s1923] sm:$0xff]
  %v1925 = vld [vmem:[%s1923 + $0x8] sm:$0xff]
  %v1926 = vld [vmem:[%s1923 + $0x10] sm:$0xff]
  %v1927 = vld [vmem:[%s1923 + $0x18] sm:$0xff]
  %v1928 = vld [vmem:[%s1923 + $0x20] sm:$0xff]
  %v1929 = vld [vmem:[%s1923 + $0x28] sm:$0xff]
  %v1930 = vld [vmem:[%s1923 + $0x30] sm:$0xff]
  %v1931 = vld [vmem:[%s1923 + $0x38] sm:$0xff]
  %1932 = vmatprep.subr.bf16.mxu0 %v736
  %1933 = vmatpush1.bf16.msra.mxu0 %v735
  %1934 = vmatprep.subr.bf16.mxu0 %v740
  %1935 = vmatpush1.bf16.msra.mxu0 %v739
  %1936 = vmatprep.subr.bf16.mxu0 %v744
  %1937 = vmatpush1.bf16.msra.mxu0 %v743
  %1938 = vmatprep.subr.bf16.mxu0 %v748
  %1939 = vmatpush1.bf16.msra.mxu0 %v747
  %1940 = vmatprep.subr.bf16.mxu0 %v752
  %1941 = vmatpush1.bf16.msra.mxu0 %v751
  %1942 = vmatprep.subr.bf16.mxu0 %v756
  %1943 = vmatpush1.bf16.msra.mxu0 %v755
  %1944 = vmatprep.subr.bf16.mxu0 %v760
  %1945 = vmatpush1.bf16.msra.mxu0 %v759
  %1946 = vmatprep.subr.bf16.mxu0 %v764
  %1947 = vmatpush1.bf16.msra.mxu0 %v763
  %1948 = vmatprep.subr.bf16.mxu0 0
  %1949 = vmatpush1.bf16.msra.mxu0 0
  %1950 = vmatprep.subr.bf16.mxu0 0
  %1951 = vmatpush1.bf16.msra.mxu0 0
  %1952 = vmatprep.subr.bf16.mxu0 0
  %1953 = vmatpush1.bf16.msra.mxu0 0
  %1954 = vmatprep.subr.bf16.mxu0 0
  %1955 = vmatpush1.bf16.msra.mxu0 0
  %1956 = vmatprep.subr.bf16.mxu0 0
  %1957 = vmatpush1.bf16.msra.mxu0 0
  %1958 = vmatprep.subr.bf16.mxu0 0
  %1959 = vmatpush1.bf16.msra.mxu0 0
  %1960 = vmatprep.subr.bf16.mxu0 0
  %1961 = vmatpush1.bf16.msra.mxu0 0
  %1962 = vmatprep.subr.bf16.mxu0 0
  %1963 = vmatpush1.bf16.msra.mxu0 0
  %1964 = vmatprep.mubr.bf16.mxu0 0
  %1965 = vmatmul.mubr.bf16.gmra.mrb[0].mxu0 %v1912
  %v1966 = vpop.f32.mrb[0].mxu0
  %v1967 = vadd.f32 0.0, %v1966
  %v1968 = vpop.f32.mrb[0].mxu0
  %v1969 = vadd.f32 0.0, %v1968
  %v1970 = vpop.f32.mrb[0].mxu0
  %v1971 = vadd.f32 0.0, %v1970
  %v1972 = vpop.f32.mrb[0].mxu0
  %v1973 = vadd.f32 0.0, %v1972
  %1974 = vdwg.mxu0
  %1975 = vmatprep.subr.bf16.mxu0 %v738
  %1976 = vmatpush1.bf16.msra.mxu0 %v737
  %1977 = vmatprep.subr.bf16.mxu0 %v742
  %1978 = vmatpush1.bf16.msra.mxu0 %v741
  %1979 = vmatprep.subr.bf16.mxu0 %v746
  %1980 = vmatpush1.bf16.msra.mxu0 %v745
  %1981 = vmatprep.subr.bf16.mxu0 %v750
  %1982 = vmatpush1.bf16.msra.mxu0 %v749
  %1983 = vmatprep.subr.bf16.mxu0 %v754
  %1984 = vmatpush1.bf16.msra.mxu0 %v753
  %1985 = vmatprep.subr.bf16.mxu0 %v758
  %1986 = vmatpush1.bf16.msra.mxu0 %v757
  %1987 = vmatprep.subr.bf16.mxu0 %v762
  %1988 = vmatpush1.bf16.msra.mxu0 %v761
  %1989 = vmatprep.subr.bf16.mxu0 %v766
  %1990 = vmatpush1.bf16.msra.mxu0 %v765
  %1991 = vmatprep.subr.bf16.mxu0 0
  %1992 = vmatpush1.bf16.msra.mxu0 0
  %1993 = vmatprep.subr.bf16.mxu0 0
  %1994 = vmatpush1.bf16.msra.mxu0 0
  %1995 = vmatprep.subr.bf16.mxu0 0
  %1996 = vmatpush1.bf16.msra.mxu0 0
  %1997 = vmatprep.subr.bf16.mxu0 0
  %1998 = vmatpush1.bf16.msra.mxu0 0
  %1999 = vmatprep.subr.bf16.mxu0 0
  %2000 = vmatpush1.bf16.msra.mxu0 0
  %2001 = vmatprep.subr.bf16.mxu0 0
  %2002 = vmatpush1.bf16.msra.mxu0 0
  %2003 = vmatprep.subr.bf16.mxu0 0
  %2004 = vmatpush1.bf16.msra.mxu0 0
  %2005 = vmatprep.subr.bf16.mxu0 0
  %2006 = vmatpush1.bf16.msra.mxu0 0
  %2007 = vmatprep.mubr.bf16.mxu0 0
  %2008 = vmatmul.mubr.bf16.gmra.mrb[0].mxu0 %v1912
  %v2009 = vpop.f32.mrb[0].mxu0
  %v2010 = vadd.f32 0.0, %v2009
  %v2011 = vpop.f32.mrb[0].mxu0
  %v2012 = vadd.f32 0.0, %v2011
  %v2013 = vpop.f32.mrb[0].mxu0
  %v2014 = vadd.f32 0.0, %v2013
  %v2015 = vpop.f32.mrb[0].mxu0
  %v2016 = vadd.f32 0.0, %v2015
  %2017 = vdwg.mxu0
  %v2018 = vadd.f32 %v1924, %v1967
  %v2019 = vadd.f32 %v1925, %v1969
  %v2020 = vadd.f32 %v1926, %v2010
  %v2021 = vadd.f32 %v1927, %v2012
  %v2022 = vadd.f32 %v1928, %v1971
  %v2023 = vadd.f32 %v1929, %v1973
  %v2024 = vadd.f32 %v1930, %v2014
  %v2025 = vadd.f32 %v1931, %v2016
  %v2026 = vxor.u32 %v2018, 2147483648
  %v2027 = vxor.u32 %v2022, 2147483648
  %v2028 = vmul.f32 %v2026, 1.442695
  %v2029 = vpow.pop %v2028
  %v2030 = vmul.f32 %v2027, 1.442695
  %v2031 = vpow.pop %v2030
  %v2032 = vadd.f32 %v2029, 1.0
  %v2033 = vadd.f32 %v2031, 1.0
  %v2034 = vrcp.pop %v2032
  %v2035 = vmul.f32 1.0, %v2034
  %v2036 = vrcp.pop %v2033
  %v2037 = vmul.f32 1.0, %v2036
  %v2038 = vxor.u32 %v2019, 2147483648
  %v2039 = vxor.u32 %v2023, 2147483648
  %v2040 = vmul.f32 %v2038, 1.442695
  %v2041 = vpow.pop %v2040
  %v2042 = vmul.f32 %v2039, 1.442695
  %v2043 = vpow.pop %v2042
  %v2044 = vadd.f32 %v2041, 1.0
  %v2045 = vadd.f32 %v2043, 1.0
  %v2046 = vrcp.pop %v2044
  %v2047 = vmul.f32 1.0, %v2046
  %v2048 = vrcp.pop %v2045
  %v2049 = vmul.f32 1.0, %v2048
  %v2050 = vtanh.pop %v2020
  %v2051 = vtanh.pop %v2024
  %v2052 = vxor.u32 %v2021, 2147483648
  %v2053 = vxor.u32 %v2025, 2147483648
  %v2054 = vmul.f32 %v2052, 1.442695
  %v2055 = vpow.pop %v2054
  %v2056 = vmul.f32 %v2053, 1.442695
  %v2057 = vpow.pop %v2056
  %v2058 = vadd.f32 %v2055, 1.0
  %v2059 = vadd.f32 %v2057, 1.0
  %v2060 = vrcp.pop %v2058
  %v2061 = vmul.f32 1.0, %v2060
  %v2062 = vrcp.pop %v2059
  %v2063 = vmul.f32 1.0, %v2062
  %v2064 = vmul.f32 %v2047, %v1906
  %v2065 = vmul.f32 %v2049, %v1907
  %v2066 = vmul.f32 %v2035, %v2050
  %v2067 = vmul.f32 %v2037, %v2051
  %v2068 = vadd.f32 %v2064, %v2066
  %v2069 = vadd.f32 %v2065, %v2067
  %v2070 = vtanh.pop %v2068
  %v2071 = vtanh.pop %v2069
  %v2072 = vmul.f32 %v2061, %v2070
  %v2073 = vmul.f32 %v2063, %v2071
  %v2074 = vpack.c.bf16 %v2073, %v2072
  %v2076 = vunpack.c.l.b16 %v2074
  %v2077 = vunpack.c.h.b16 %v2074
  %v2078 = vpack.c.b16 %v2076, %v2076
  %v2079 = vpack.c.b16 %v2077, %v2077
  %s2082 = scalar_lea.vmem %s4, 56
  %2083 = vst [vmem:[%s2082] sm:$0xf] %v2078
  %2084 = vst [vmem:[%s2082 + $0x4] sm:$0xf] %v2079
  %2085 = vst [vmem:[#allocation2] sm:$0xff] %v2072
  %2086 = vst [vmem:[#allocation2 + $0x8] sm:$0xff] %v2073
  %2087 = vst [vmem:[#allocation3] sm:$0xff] %v2068
  %2088 = vst [vmem:[#allocation3 + $0x8] sm:$0xff] %v2069
  // Predicated region
  $region22: #{lstm_lm_forward.3} parent=0 // pred_check
    _
  $region23: #{lstm_lm_forward.3} parent=0 // pred_check_branch
    %2090 = sbr.rel (0) target = $region25
  $region24: #{lstm_lm_forward.3} parent=0 // pred_region
    _
  $region25: #{lstm_lm_forward.3} parent=0 // pred_fallthru
    _
  // Predicated region
  $region26: #{lstm_lm_forward.3} parent=0 // pred_check
    _
  $region27: #{lstm_lm_forward.3} parent=0 // pred_check_branch
    %2092 = sbr.rel (0) target = $region29
  $region28: #{lstm_lm_forward.3} parent=0 // pred_region
    _
  $region29: #{lstm_lm_forward.3} parent=0 // pred_fallthru
    _

</llo_original>
